<compile_context>
chip_gen: v7x
topology: tpu7x:2x2x1
jax: 0.10.0
libtpu: 0.0.40
codegen_flags: <defaults>
</compile_context>

<pallas_src>
import functools

import jax
import jax.numpy as jnp
from jax import lax
from jax.experimental import pallas as pl
from jax.experimental.pallas import tpu as pltpu


def _fused_reassemble_kernel(x_ref, w1_ref, b1_ref, w2_ref, b2_ref, w3_ref,
                             o_ref, sb2_ref, s3_ref, *,
                             hp, wh, feat, cin, compute_dtype):
    """Fused conv1(1x1)+ReLU -> conv2(3x3,s2)+ReLU -> conv3(3x3,s1) for one image.

    x_ref  : (1, hp*wh, 4*cin)   2x2 space-to-depth tokens (quadrant-major channels)
    w1_ref : (cin, feat)         b1_ref: (1, feat)
    w2_ref : (9*feat, feat)      b2_ref: (1, feat)   rows are tap-major (k=ky*3+kx)
    w3_ref : (9*feat, fout)      (no bias)
    o_ref  : (1, hp*(wh+2), fout)   flattened output rows, 2 junk cols per row
    sb2_ref: ((hp+2)*(wh+1), 4*feat) f32 scratch -- zero-padded conv1 output (s2d)
    s3_ref : ((hp+3)*(wh+2), feat)   f32 scratch -- zero-padded conv2 output
    """
    x = x_ref[0]                                   # (hp*wh, 4*cin), compute dtype
    w1 = w1_ref[...]
    b1 = b1_ref[...].astype(jnp.float32)

    # ---- conv1: 1x1 conv + ReLU, one matmul per s2d quadrant -----------------
    y1_parts = []
    for q in range(4):
        xq = x[:, q * cin:(q + 1) * cin]
        acc = jnp.dot(xq, w1, preferred_element_type=jnp.float32)
        y1_parts.append(jnp.maximum(acc + b1, 0.0))
    y1 = jnp.concatenate(y1_parts, axis=1)         # (hp*wh, 4*feat) f32

    # ---- scatter conv1 output into the zero-padded s2d scratch ---------------
    # scratch block (bi, bj) (bi in [0,hp], bj in [0,wh]) holds natural block
    # (bi-1, bj-1); block row/col 0 stays zero = conv padding.
    sb2_ref[...] = jnp.zeros(sb2_ref.shape, sb2_ref.dtype)
    for vi in range(hp):
        dst = (vi + 1) * (wh + 1) + 1
        sb2_ref[dst:dst + wh, :] = y1[vi * wh:(vi + 1) * wh, :]

    # ---- conv2: 3x3 stride-2 conv + ReLU, folded into ONE matmul -------------
    # In s2d coords, tap (ky,kx) reads scratch block (oy+dy, ox+dx), quadrant q.
    m2 = hp * (wh + 1)                             # includes 1 junk column per row
    taps2 = []
    for ky in range(3):
        dy = 0 if ky == 0 else 1
        qr = (ky + 1) % 2
        for kx in range(3):
            dx = 0 if kx == 0 else 1
            qc = (kx + 1) % 2
            q = qr * 2 + qc
            start = dy * (wh + 1) + dx
            taps2.append(sb2_ref[start:start + m2, q * feat:(q + 1) * feat])
    t2 = jnp.concatenate(taps2, axis=1).astype(compute_dtype)   # (m2, 9*feat)
    y2 = jnp.dot(t2, w2_ref[...], preferred_element_type=jnp.float32)
    y2 = jnp.maximum(y2 + b2_ref[...].astype(jnp.float32), 0.0)  # (m2, feat) f32

    # ---- scatter conv2 output into the zero-padded conv3 scratch -------------
    s3_ref[...] = jnp.zeros(s3_ref.shape, s3_ref.dtype)
    for oy in range(hp):
        dst = (oy + 1) * (wh + 2) + 1
        s3_ref[dst:dst + wh, :] = y2[oy * (wh + 1):oy * (wh + 1) + wh, :]

    # ---- conv3: 3x3 stride-1 conv (bias=False), folded into ONE matmul -------
    m3 = hp * (wh + 2)                             # 2 junk columns per row
    taps3 = []
    for ky in range(3):
        for kx in range(3):
            start = ky * (wh + 2) + kx
            taps3.append(s3_ref[start:start + m3, :])
    t3 = jnp.concatenate(taps3, axis=1).astype(compute_dtype)   # (m3, 9*feat)
    y3 = jnp.dot(t3, w3_ref[...], preferred_element_type=jnp.float32)

    o_ref[...] = y3[None].astype(o_ref.dtype)


def reassemble_forward(x_tokens, params, h16, w16, *, compute_dtype=jnp.float32):
    """x_tokens: (B, 1 + h16*w16, Cin). Returns NCHW (B, Fout, h16//2, w16//2)."""
    B, n_tok, cin = x_tokens.shape
    assert n_tok == 1 + h16 * w16
    assert h16 % 2 == 0 and w16 % 2 == 0, "stride-2 path assumes an even patch grid"
    hp, wh = h16 // 2, w16 // 2
    feat = params["w1"].shape[-1]
    fout = params["w3"].shape[-1]

    # Drop CLS token and do a single 2x2 space-to-depth rearrangement (one XLA
    # pass, 1x bytes).  This replaces the old 9x im2col HBM materialization.
    x = x_tokens[:, 1:, :].reshape(B, hp, 2, wh, 2, cin)
    x = jnp.transpose(x, (0, 1, 3, 2, 4, 5)).reshape(B, hp * wh, 4 * cin)
    x = x.astype(compute_dtype)

    w1 = params["w1"].astype(compute_dtype)                       # (cin, feat)
    b1 = params["b1"].reshape(1, feat).astype(jnp.float32)
    w2 = params["w2"].reshape(9 * feat, feat).astype(compute_dtype)
    b2 = params["b2"].reshape(1, feat).astype(jnp.float32)
    w3 = params["w3"].reshape(9 * feat, fout).astype(compute_dtype)

    m1 = hp * wh
    m3 = hp * (wh + 2)

    kernel = functools.partial(_fused_reassemble_kernel, hp=hp, wh=wh,
                               feat=feat, cin=cin, compute_dtype=compute_dtype)

    out = pl.pallas_call(
        kernel,
        out_shape=jax.ShapeDtypeStruct((B, m3, fout), jnp.float32),
        grid_spec=pltpu.PrefetchScalarGridSpec(
            num_scalar_prefetch=0,
            grid=(B,),
            in_specs=[
                pl.BlockSpec((1, m1, 4 * cin), lambda b: (b, 0, 0)),
                pl.BlockSpec((cin, feat), lambda b: (0, 0)),       # resident
                pl.BlockSpec((1, feat), lambda b: (0, 0)),
                pl.BlockSpec((9 * feat, feat), lambda b: (0, 0)),
                pl.BlockSpec((1, feat), lambda b: (0, 0)),
                pl.BlockSpec((9 * feat, fout), lambda b: (0, 0)),
            ],
            out_specs=pl.BlockSpec((1, m3, fout), lambda b: (b, 0, 0)),
            scratch_shapes=[
                pltpu.VMEM(((hp + 2) * (wh + 1), 4 * feat), jnp.float32),
                pltpu.VMEM(((hp + 3) * (wh + 2), feat), jnp.float32),
            ],
        ),
        compiler_params=pltpu.CompilerParams(
            dimension_semantics=("parallel",)),
    )(x, w1, b1, w2, b2, w3)

    # Strip the junk columns and emit NCHW (tiny tensor, one cheap XLA pass).
    out = out.reshape(B, hp, wh + 2, fout)[:, :, :wh, :]
    return jnp.transpose(out, (0, 3, 1, 2))


def reference_forward(x_tokens, params, h16, w16):
    """Pure-JAX reference (lax.conv) for correctness checking."""
    B, _, cin = x_tokens.shape
    feat = params["w1"].shape[-1]
    fout = params["w3"].shape[-1]
    x = x_tokens[:, 1:, :].reshape(B, h16, w16, cin)
    y = jax.nn.relu(jnp.einsum("bhwc,cf->bhwf", x, params["w1"]) + params["b1"][0])
    w2 = params["w2"].reshape(3, 3, feat, feat)     # (k, Cin, Cout) -> HWIO
    y = lax.conv_general_dilated(y, w2, (2, 2), ((1, 1), (1, 1)),
                                 dimension_numbers=("NHWC", "HWIO", "NHWC"))
    y = jax.nn.relu(y + params["b2"][0])
    w3 = params["w3"].reshape(3, 3, feat, fout)
    y = lax.conv_general_dilated(y, w3, (1, 1), ((1, 1), (1, 1)),
                                 dimension_numbers=("NHWC", "HWIO", "NHWC"))
    return jnp.transpose(y, (0, 3, 1, 2))


if __name__ == "__main__":
    # Scaled-down shapes consistent with the module's forward:
    #   8x8 patch grid, input_features=32, features=48, output_features=16
    B, H16, W16 = 2, 8, 8
    CIN, FEAT, FOUT = 32, 48, 16

    key = jax.random.PRNGKey(0)
    ks = jax.random.split(key, 6)
    x = jax.random.normal(ks[0], (B, 1 + H16 * W16, CIN), jnp.float32)

    params = {
        # conv weights stored tap-major as (K, Cin, Cout), K = ky*3 + kx
        "w1": jax.random.normal(ks[1], (CIN, FEAT), jnp.float32) * 0.1,
        "b1": jax.random.normal(ks[2], (1, FEAT), jnp.float32) * 0.1,
        "w2": jax.random.normal(ks[3], (9, FEAT, FEAT), jnp.float32) * 0.05,
        "b2": jax.random.normal(ks[4], (1, FEAT), jnp.float32) * 0.1,
        "w3": jax.random.normal(ks[5], (9, FEAT, FOUT), jnp.float32) * 0.05,
        # out conv has bias=False -> no b3 at all
    }

    out = jax.block_until_ready(reassemble_forward(x, params, H16, W16))
    ref = jax.block_until_ready(reference_forward(x, params, H16, W16))
    assert out.shape == (B, FOUT, H16 // 2, W16 // 2), out.shape
    err = float(jnp.abs(out - ref).max())
    assert jnp.allclose(out, ref, atol=5e-4, rtol=5e-4), err

    # bf16 MXU path: halves HBM/weight bytes, doubles matmul throughput.
    out_bf16 = jax.block_until_ready(
        reassemble_forward(x, params, H16, W16, compute_dtype=jnp.bfloat16))
    err_bf16 = float(jnp.abs(out_bf16 - ref).max())
    assert jnp.allclose(out_bf16, ref, atol=0.3), err_bf16

    print("KERNEL_OK")
</pallas_src>

<mosaic_0001>
module attributes {stable_mosaic.version = 11 : i64} {
  func.func @_fused_reassemble_kernel(%arg0: i32, %arg1: memref<1x16x128xf32, #tpu.memory_space<vmem>>, %arg2: memref<32x48xf32, #tpu.memory_space<vmem>>, %arg3: memref<1x48xf32, #tpu.memory_space<vmem>>, %arg4: memref<432x48xf32, #tpu.memory_space<vmem>>, %arg5: memref<1x48xf32, #tpu.memory_space<vmem>>, %arg6: memref<432x16xf32, #tpu.memory_space<vmem>>, %arg7: memref<1x24x16xf32, #tpu.memory_space<vmem>>, %arg8: memref<30x192xf32, #tpu.memory_space<vmem>>, %arg9: memref<42x48xf32, #tpu.memory_space<vmem>>) attributes {dimension_semantics = [#tpu.dimension_semantics<parallel>], iteration_bounds = array<i64: 2>, scalar_prefetch = 0 : i64, scratch_operands = 2 : i64, tpu.core_type = #tpu.core_type<tc>, window_params = [{transform_indices = @transform_0, window_bounds = array<i64: 1, 16, 128>}, {pipeline_mode = #tpu.pipeline_mode<synchronous>, transform_indices = @transform_1, window_bounds = array<i64: 32, 48>}, {pipeline_mode = #tpu.pipeline_mode<synchronous>, transform_indices = @transform_2, window_bounds = array<i64: 1, 48>}, {pipeline_mode = #tpu.pipeline_mode<synchronous>, transform_indices = @transform_3, window_bounds = array<i64: 432, 48>}, {pipeline_mode = #tpu.pipeline_mode<synchronous>, transform_indices = @transform_4, window_bounds = array<i64: 1, 48>}, {pipeline_mode = #tpu.pipeline_mode<synchronous>, transform_indices = @transform_5, window_bounds = array<i64: 432, 16>}, {transform_indices = @transform_6, window_bounds = array<i64: 1, 24, 16>}]} {
    %c0 = arith.constant 0 : index
    %c0_0 = arith.constant 0 : index
    %c0_1 = arith.constant 0 : index
    %0 = vector.load %arg1[%c0, %c0_0, %c0_1] : memref<1x16x128xf32, #tpu.memory_space<vmem>>, vector<1x16x128xf32>
    %1 = vector.shape_cast %0 : vector<1x16x128xf32> to vector<16x128xf32>
    %c0_2 = arith.constant 0 : index
    %c0_3 = arith.constant 0 : index
    %2 = vector.load %arg2[%c0_2, %c0_3] : memref<32x48xf32, #tpu.memory_space<vmem>>, vector<32x48xf32>
    %c0_4 = arith.constant 0 : index
    %c0_5 = arith.constant 0 : index
    %3 = vector.load %arg3[%c0_4, %c0_5] : memref<1x48xf32, #tpu.memory_space<vmem>>, vector<1x48xf32>
    %4 = vector.extract_strided_slice %1 {offsets = [0, 0], sizes = [16, 32], strides = [1, 1]} : vector<16x128xf32> to vector<16x32xf32>
    %cst = arith.constant dense<0.000000e+00> : vector<16x48xf32>
    %5 = tpu.matmul %4, %2, %cst {dimension_numbers = #tpu.dot_dimension_numbers<[1], [0], [0], [1], [0, 0, 1, 1], [], []>} : vector<16x32xf32>, vector<32x48xf32>, vector<16x48xf32> -> vector<16x48xf32>
    %6 = vector.broadcast %3 : vector<1x48xf32> to vector<16x48xf32>
    %7 = arith.addf %5, %6 : vector<16x48xf32>
    %cst_6 = arith.constant 0.000000e+00 : f32
    %8 = vector.broadcast %cst_6 : f32 to vector<16x48xf32>
    %9 = arith.maximumf %7, %8 : vector<16x48xf32>
    %10 = vector.extract_strided_slice %1 {offsets = [0, 32], sizes = [16, 32], strides = [1, 1]} : vector<16x128xf32> to vector<16x32xf32>
    %cst_7 = arith.constant dense<0.000000e+00> : vector<16x48xf32>
    %11 = tpu.matmul %10, %2, %cst_7 {dimension_numbers = #tpu.dot_dimension_numbers<[1], [0], [0], [1], [0, 0, 1, 1], [], []>} : vector<16x32xf32>, vector<32x48xf32>, vector<16x48xf32> -> vector<16x48xf32>
    %12 = vector.broadcast %3 : vector<1x48xf32> to vector<16x48xf32>
    %13 = arith.addf %11, %12 : vector<16x48xf32>
    %cst_8 = arith.constant 0.000000e+00 : f32
    %14 = vector.broadcast %cst_8 : f32 to vector<16x48xf32>
    %15 = arith.maximumf %13, %14 : vector<16x48xf32>
    %16 = vector.extract_strided_slice %1 {offsets = [0, 64], sizes = [16, 32], strides = [1, 1]} : vector<16x128xf32> to vector<16x32xf32>
    %cst_9 = arith.constant dense<0.000000e+00> : vector<16x48xf32>
    %17 = tpu.matmul %16, %2, %cst_9 {dimension_numbers = #tpu.dot_dimension_numbers<[1], [0], [0], [1], [0, 0, 1, 1], [], []>} : vector<16x32xf32>, vector<32x48xf32>, vector<16x48xf32> -> vector<16x48xf32>
    %18 = vector.broadcast %3 : vector<1x48xf32> to vector<16x48xf32>
    %19 = arith.addf %17, %18 : vector<16x48xf32>
    %cst_10 = arith.constant 0.000000e+00 : f32
    %20 = vector.broadcast %cst_10 : f32 to vector<16x48xf32>
    %21 = arith.maximumf %19, %20 : vector<16x48xf32>
    %22 = vector.extract_strided_slice %1 {offsets = [0, 96], sizes = [16, 32], strides = [1, 1]} : vector<16x128xf32> to vector<16x32xf32>
    %cst_11 = arith.constant dense<0.000000e+00> : vector<16x48xf32>
    %23 = tpu.matmul %22, %2, %cst_11 {dimension_numbers = #tpu.dot_dimension_numbers<[1], [0], [0], [1], [0, 0, 1, 1], [], []>} : vector<16x32xf32>, vector<32x48xf32>, vector<16x48xf32> -> vector<16x48xf32>
    %24 = vector.broadcast %3 : vector<1x48xf32> to vector<16x48xf32>
    %25 = arith.addf %23, %24 : vector<16x48xf32>
    %cst_12 = arith.constant 0.000000e+00 : f32
    %26 = vector.broadcast %cst_12 : f32 to vector<16x48xf32>
    %27 = arith.maximumf %25, %26 : vector<16x48xf32>
    %28 = tpu.concatenate %9, %15, %21, %27 in 1 : vector<16x48xf32>, vector<16x48xf32>, vector<16x48xf32>, vector<16x48xf32> -> vector<16x192xf32>
    %cst_13 = arith.constant 0.000000e+00 : f32
    %29 = vector.broadcast %cst_13 : f32 to vector<30x192xf32>
    %c0_14 = arith.constant 0 : index
    %c0_15 = arith.constant 0 : index
    %30 = vector.load %arg8[%c0_14, %c0_15] : memref<30x192xf32, #tpu.memory_space<vmem>>, vector<30x192xf32>
    tpu.vector_store %arg8[%c0_14, %c0_15], %29 {strides = array<i32>} : memref<30x192xf32, #tpu.memory_space<vmem>>, vector<30x192xf32>,
    %31 = vector.extract_strided_slice %28 {offsets = [0, 0], sizes = [4, 192], strides = [1, 1]} : vector<16x192xf32> to vector<4x192xf32>
    %c6 = arith.constant 6 : index
    %c0_16 = arith.constant 0 : index
    %32 = vector.load %arg8[%c6, %c0_16] : memref<30x192xf32, #tpu.memory_space<vmem>>, vector<4x192xf32>
    tpu.vector_store %arg8[%c6, %c0_16], %31 {strides = array<i32>} : memref<30x192xf32, #tpu.memory_space<vmem>>, vector<4x192xf32>,
    %33 = vector.extract_strided_slice %28 {offsets = [4, 0], sizes = [4, 192], strides = [1, 1]} : vector<16x192xf32> to vector<4x192xf32>
    %c11 = arith.constant 11 : index
    %c0_17 = arith.constant 0 : index
    %34 = vector.load %arg8[%c11, %c0_17] : memref<30x192xf32, #tpu.memory_space<vmem>>, vector<4x192xf32>
    tpu.vector_store %arg8[%c11, %c0_17], %33 {strides = array<i32>} : memref<30x192xf32, #tpu.memory_space<vmem>>, vector<4x192xf32>,
    %35 = vector.extract_strided_slice %28 {offsets = [8, 0], sizes = [4, 192], strides = [1, 1]} : vector<16x192xf32> to vector<4x192xf32>
    %c16 = arith.constant 16 : index
    %c0_18 = arith.constant 0 : index
    %36 = vector.load %arg8[%c16, %c0_18] : memref<30x192xf32, #tpu.memory_space<vmem>>, vector<4x192xf32>
    tpu.vector_store %arg8[%c16, %c0_18], %35 {strides = array<i32>} : memref<30x192xf32, #tpu.memory_space<vmem>>, vector<4x192xf32>,
    %37 = vector.extract_strided_slice %28 {offsets = [12, 0], sizes = [4, 192], strides = [1, 1]} : vector<16x192xf32> to vector<4x192xf32>
    %c21 = arith.constant 21 : index
    %c0_19 = arith.constant 0 : index
    %38 = vector.load %arg8[%c21, %c0_19] : memref<30x192xf32, #tpu.memory_space<vmem>>, vector<4x192xf32>
    tpu.vector_store %arg8[%c21, %c0_19], %37 {strides = array<i32>} : memref<30x192xf32, #tpu.memory_space<vmem>>, vector<4x192xf32>,
    %c0_20 = arith.constant 0 : index
    %c144 = arith.constant 144 : index
    %39 = vector.load %arg8[%c0_20, %c144] : memref<30x192xf32, #tpu.memory_space<vmem>>, vector<20x48xf32>
    %c1 = arith.constant 1 : index
    %c96 = arith.constant 96 : index
    %40 = vector.load %arg8[%c1, %c96] : memref<30x192xf32, #tpu.memory_space<vmem>>, vector<20x48xf32>
    %c1_21 = arith.constant 1 : index
    %c144_22 = arith.constant 144 : index
    %41 = vector.load %arg8[%c1_21, %c144_22] : memref<30x192xf32, #tpu.memory_space<vmem>>, vector<20x48xf32>
    %c5 = arith.constant 5 : index
    %c48 = arith.constant 48 : index
    %42 = vector.load %arg8[%c5, %c48] : memref<30x192xf32, #tpu.memory_space<vmem>>, vector<20x48xf32>
    %c6_23 = arith.constant 6 : index
    %c0_24 = arith.constant 0 : index
    %43 = vector.load %arg8[%c6_23, %c0_24] : memref<30x192xf32, #tpu.memory_space<vmem>>, vector<20x48xf32>
    %c6_25 = arith.constant 6 : index
    %c48_26 = arith.constant 48 : index
    %44 = vector.load %arg8[%c6_25, %c48_26] : memref<30x192xf32, #tpu.memory_space<vmem>>, vector<20x48xf32>
    %c5_27 = arith.constant 5 : index
    %c144_28 = arith.constant 144 : index
    %45 = vector.load %arg8[%c5_27, %c144_28] : memref<30x192xf32, #tpu.memory_space<vmem>>, vector<20x48xf32>
    %c6_29 = arith.constant 6 : index
    %c96_30 = arith.constant 96 : index
    %46 = vector.load %arg8[%c6_29, %c96_30] : memref<30x192xf32, #tpu.memory_space<vmem>>, vector<20x48xf32>
    %c6_31 = arith.constant 6 : index
    %c144_32 = arith.constant 144 : index
    %47 = vector.load %arg8[%c6_31, %c144_32] : memref<30x192xf32, #tpu.memory_space<vmem>>, vector<20x48xf32>
    %48 = tpu.concatenate %39, %40, %41, %42, %43, %44, %45, %46, %47 in 1 : vector<20x48xf32>, vector<20x48xf32>, vector<20x48xf32>, vector<20x48xf32>, vector<20x48xf32>, vector<20x48xf32>, vector<20x48xf32>, vector<20x48xf32>, vector<20x48xf32> -> vector<20x432xf32>
    %c0_33 = arith.constant 0 : index
    %c0_34 = arith.constant 0 : index
    %49 = vector.load %arg4[%c0_33, %c0_34] : memref<432x48xf32, #tpu.memory_space<vmem>>, vector<432x48xf32>
    %cst_35 = arith.constant dense<0.000000e+00> : vector<20x48xf32>
    %50 = tpu.matmul %48, %49, %cst_35 {dimension_numbers = #tpu.dot_dimension_numbers<[1], [0], [0], [1], [0, 0, 1, 1], [], []>} : vector<20x432xf32>, vector<432x48xf32>, vector<20x48xf32> -> vector<20x48xf32>
    %c0_36 = arith.constant 0 : index
    %c0_37 = arith.constant 0 : index
    %51 = vector.load %arg5[%c0_36, %c0_37] : memref<1x48xf32, #tpu.memory_space<vmem>>, vector<1x48xf32>
    %52 = vector.broadcast %51 : vector<1x48xf32> to vector<20x48xf32>
    %53 = arith.addf %50, %52 : vector<20x48xf32>
    %cst_38 = arith.constant 0.000000e+00 : f32
    %54 = vector.broadcast %cst_38 : f32 to vector<20x48xf32>
    %55 = arith.maximumf %53, %54 : vector<20x48xf32>
    %cst_39 = arith.constant 0.000000e+00 : f32
    %56 = vector.broadcast %cst_39 : f32 to vector<42x48xf32>
    %c0_40 = arith.constant 0 : index
    %c0_41 = arith.constant 0 : index
    %57 = vector.load %arg9[%c0_40, %c0_41] : memref<42x48xf32, #tpu.memory_space<vmem>>, vector<42x48xf32>
    tpu.vector_store %arg9[%c0_40, %c0_41], %56 {strides = array<i32>} : memref<42x48xf32, #tpu.memory_space<vmem>>, vector<42x48xf32>,
    %58 = vector.extract_strided_slice %55 {offsets = [0, 0], sizes = [4, 48], strides = [1, 1]} : vector<20x48xf32> to vector<4x48xf32>
    %c7 = arith.constant 7 : index
    %c0_42 = arith.constant 0 : index
    %59 = vector.load %arg9[%c7, %c0_42] : memref<42x48xf32, #tpu.memory_space<vmem>>, vector<4x48xf32>
    tpu.vector_store %arg9[%c7, %c0_42], %58 {strides = array<i32>} : memref<42x48xf32, #tpu.memory_space<vmem>>, vector<4x48xf32>,
    %60 = vector.extract_strided_slice %55 {offsets = [5, 0], sizes = [4, 48], strides = [1, 1]} : vector<20x48xf32> to vector<4x48xf32>
    %c13 = arith.constant 13 : index
    %c0_43 = arith.constant 0 : index
    %61 = vector.load %arg9[%c13, %c0_43] : memref<42x48xf32, #tpu.memory_space<vmem>>, vector<4x48xf32>
    tpu.vector_store %arg9[%c13, %c0_43], %60 {strides = array<i32>} : memref<42x48xf32, #tpu.memory_space<vmem>>, vector<4x48xf32>,
    %62 = vector.extract_strided_slice %55 {offsets = [10, 0], sizes = [4, 48], strides = [1, 1]} : vector<20x48xf32> to vector<4x48xf32>
    %c19 = arith.constant 19 : index
    %c0_44 = arith.constant 0 : index
    %63 = vector.load %arg9[%c19, %c0_44] : memref<42x48xf32, #tpu.memory_space<vmem>>, vector<4x48xf32>
    tpu.vector_store %arg9[%c19, %c0_44], %62 {strides = array<i32>} : memref<42x48xf32, #tpu.memory_space<vmem>>, vector<4x48xf32>,
    %64 = vector.extract_strided_slice %55 {offsets = [15, 0], sizes = [4, 48], strides = [1, 1]} : vector<20x48xf32> to vector<4x48xf32>
    %c25 = arith.constant 25 : index
    %c0_45 = arith.constant 0 : index
    %65 = vector.load %arg9[%c25, %c0_45] : memref<42x48xf32, #tpu.memory_space<vmem>>, vector<4x48xf32>
    tpu.vector_store %arg9[%c25, %c0_45], %64 {strides = array<i32>} : memref<42x48xf32, #tpu.memory_space<vmem>>, vector<4x48xf32>,
    %c0_46 = arith.constant 0 : index
    %c0_47 = arith.constant 0 : index
    %66 = vector.load %arg9[%c0_46, %c0_47] : memref<42x48xf32, #tpu.memory_space<vmem>>, vector<24x48xf32>
    %c1_48 = arith.constant 1 : index
    %c0_49 = arith.constant 0 : index
    %67 = vector.load %arg9[%c1_48, %c0_49] : memref<42x48xf32, #tpu.memory_space<vmem>>, vector<24x48xf32>
    %c2 = arith.constant 2 : index
    %c0_50 = arith.constant 0 : index
    %68 = vector.load %arg9[%c2, %c0_50] : memref<42x48xf32, #tpu.memory_space<vmem>>, vector<24x48xf32>
    %c6_51 = arith.constant 6 : index
    %c0_52 = arith.constant 0 : index
    %69 = vector.load %arg9[%c6_51, %c0_52] : memref<42x48xf32, #tpu.memory_space<vmem>>, vector<24x48xf32>
    %c7_53 = arith.constant 7 : index
    %c0_54 = arith.constant 0 : index
    %70 = vector.load %arg9[%c7_53, %c0_54] : memref<42x48xf32, #tpu.memory_space<vmem>>, vector<24x48xf32>
    %c8 = arith.constant 8 : index
    %c0_55 = arith.constant 0 : index
    %71 = vector.load %arg9[%c8, %c0_55] : memref<42x48xf32, #tpu.memory_space<vmem>>, vector<24x48xf32>
    %c12 = arith.constant 12 : index
    %c0_56 = arith.constant 0 : index
    %72 = vector.load %arg9[%c12, %c0_56] : memref<42x48xf32, #tpu.memory_space<vmem>>, vector<24x48xf32>
    %c13_57 = arith.constant 13 : index
    %c0_58 = arith.constant 0 : index
    %73 = vector.load %arg9[%c13_57, %c0_58] : memref<42x48xf32, #tpu.memory_space<vmem>>, vector<24x48xf32>
    %c14 = arith.constant 14 : index
    %c0_59 = arith.constant 0 : index
    %74 = vector.load %arg9[%c14, %c0_59] : memref<42x48xf32, #tpu.memory_space<vmem>>, vector<24x48xf32>
    %75 = tpu.concatenate %66, %67, %68, %69, %70, %71, %72, %73, %74 in 1 : vector<24x48xf32>, vector<24x48xf32>, vector<24x48xf32>, vector<24x48xf32>, vector<24x48xf32>, vector<24x48xf32>, vector<24x48xf32>, vector<24x48xf32>, vector<24x48xf32> -> vector<24x432xf32>
    %c0_60 = arith.constant 0 : index
    %c0_61 = arith.constant 0 : index
    %76 = vector.load %arg6[%c0_60, %c0_61] : memref<432x16xf32, #tpu.memory_space<vmem>>, vector<432x16xf32>
    %cst_62 = arith.constant dense<0.000000e+00> : vector<24x16xf32>
    %77 = tpu.matmul %75, %76, %cst_62 {dimension_numbers = #tpu.dot_dimension_numbers<[1], [0], [0], [1], [0, 0, 1, 1], [], []>} : vector<24x432xf32>, vector<432x16xf32>, vector<24x16xf32> -> vector<24x16xf32>
    %78 = vector.shape_cast %77 : vector<24x16xf32> to vector<1x24x16xf32>
    %c0_63 = arith.constant 0 : index
    %c0_64 = arith.constant 0 : index
    %c0_65 = arith.constant 0 : index
    %79 = vector.load %arg7[%c0_63, %c0_64, %c0_65] : memref<1x24x16xf32, #tpu.memory_space<vmem>>, vector<1x24x16xf32>
    tpu.vector_store %arg7[%c0_63, %c0_64, %c0_65], %78 {strides = array<i32>} : memref<1x24x16xf32, #tpu.memory_space<vmem>>, vector<1x24x16xf32>,
    return
  }
  func.func @transform_0(%arg0: i32) -> (i32, i32, i32) {
    %c0_i32 = arith.constant 0 : i32
    %c0_i32_0 = arith.constant 0 : i32
    %c0_i32_1 = arith.constant 0 : i32
    return %arg0, %c0_i32, %c0_i32_0 : i32, i32, i32
  }
  func.func @transform_1(%arg0: i32) -> (i32, i32) {
    %c0_i32 = arith.constant 0 : i32
    %c0_i32_0 = arith.constant 0 : i32
    %c0_i32_1 = arith.constant 0 : i32
    return %c0_i32, %c0_i32_0 : i32, i32
  }
  func.func @transform_2(%arg0: i32) -> (i32, i32) {
    %c0_i32 = arith.constant 0 : i32
    %c0_i32_0 = arith.constant 0 : i32
    %c0_i32_1 = arith.constant 0 : i32
    return %c0_i32, %c0_i32_0 : i32, i32
  }
  func.func @transform_3(%arg0: i32) -> (i32, i32) {
    %c0_i32 = arith.constant 0 : i32
    %c0_i32_0 = arith.constant 0 : i32
    %c0_i32_1 = arith.constant 0 : i32
    return %c0_i32, %c0_i32_0 : i32, i32
  }
  func.func @transform_4(%arg0: i32) -> (i32, i32) {
    %c0_i32 = arith.constant 0 : i32
    %c0_i32_0 = arith.constant 0 : i32
    %c0_i32_1 = arith.constant 0 : i32
    return %c0_i32, %c0_i32_0 : i32, i32
  }
  func.func @transform_5(%arg0: i32) -> (i32, i32) {
    %c0_i32 = arith.constant 0 : i32
    %c0_i32_0 = arith.constant 0 : i32
    %c0_i32_1 = arith.constant 0 : i32
    return %c0_i32, %c0_i32_0 : i32, i32
  }
  func.func @transform_6(%arg0: i32) -> (i32, i32, i32) {
    %c0_i32 = arith.constant 0 : i32
    %c0_i32_0 = arith.constant 0 : i32
    %c0_i32_1 = arith.constant 0 : i32
    return %arg0, %c0_i32, %c0_i32_0 : i32, i32, i32
  }
}

</mosaic_0001>

<llo_original>
// kernel: tpu_custom_call.1
$region0: #{tpu_custom_call.1}
  #allocation0 [shape = 'u32[]', space=smem, size = 0x4, offset = 0x4, fixed_abs, tag = 'smem constant byte address 0x4 - core index']
  #allocation1 [shape = 'u32[144,128]{1,0:T(1,128)}', space=vmem, size = 0x12000, scoped, tag = 'internal scratch']
  #allocation2 [shape = 'f32[30,192]{1,0:T(8,128)}', space=vmem, size = 0x8000, scoped, tag = 'scratch operand']
  #allocation3 [shape = 'f32[42,48]{1,0:T(8,128)}', space=vmem, size = 0x6000, scoped, tag = 'scratch operand']
  %s0 = inlined_call_operand.vmem [shape: f32[2,16,128], index: 0, kind: input, shape index: {}]
  %s1 = inlined_call_operand.vmem [shape: f32[32,48], index: 1, kind: input, shape index: {}]
  %s2 = inlined_call_operand.vmem [shape: f32[1,48], index: 2, kind: input, shape index: {}]
  %s3 = inlined_call_operand.vmem [shape: f32[432,48], index: 3, kind: input, shape index: {}]
  %s4 = inlined_call_operand.vmem [shape: f32[1,48], index: 4, kind: input, shape index: {}]
  %s5 = inlined_call_operand.vmem [shape: f32[432,16], index: 5, kind: input, shape index: {}]
  %s6 = inlined_call_operand.vmem [shape: f32[2,24,16], index: 6, kind: output, shape index: {}]
  %s7 = sld [smem:[#allocation0]]
  $region57: #{tpu_custom_call.1} parent=0
    _
  %s9 = ssub.s32 1, %s7
  %s10 = scalar_select 0, %s9, %s7
  loop: start=0, step=1, limit=4
  $region2: #{tpu_custom_call.1} parent=0 // loop_pre_header
    _
  $region3: #{tpu_custom_call.1} parent=0 // loop_header
    %s12 = sphi 0, %s16
    %p13 = scmp.ge.s32.totalorder %s12, 4
    %s22 = sphi 0, %s24
    %s25 = sphi 0, %s22
    %s26 = sphi 0, %s25
    %s42 = sphi 0, %s26
    %s46 = sphi 0, %s46
    %s48 = sphi 0, %s46
    %s49 = sphi 0, %s48
    %s63 = sphi 0, %s49
    %s67 = sphi 0, %s67
    %s69 = sphi 0, %s67
    %s70 = sphi 0, %s69
    %s84 = sphi 0, %s70
    %s88 = sphi 0, %s88
    %s90 = sphi 0, %s88
    %s91 = sphi 0, %s90
    %s105 = sphi 0, %s91
    %s109 = sphi 0, %s109
    %s111 = sphi 0, %s109
    %s112 = sphi 0, %s111
    %s126 = sphi 0, %s112
    %s130 = sphi 0, %s130
    %s132 = sphi 0, %s130
    %s133 = sphi 0, %s132
    %s147 = sphi 0, %s133
    %s153 = sphi 0, %s155
    %s156 = sphi 0, %s153
    %s157 = sphi 0, %s156
    %s173 = sphi 0, %s157
  $region4: #{tpu_custom_call.1} parent=0 // loop_header_branch
    %15 = sbr.rel (%p13) target = $region8
  $region5: #{tpu_custom_call.1} parent=0 // loop_body
    %s17 = ssub.s32 %s12, 1
    %s18 = ssub.s32 %s12, 2
    %s19 = sadd.s32 %s12, 1
    %s20 = ssub.s32 %s12, %s19
    %p21 = scmp.eq.s32.totalorder %s20, 0
    %s23 = sadd.s32 %s22, 1
    %s24 = scalar_select %p21, %s22, %s23
    %p27 = pneg %p21
    %p28 = scmp.eq.s32.totalorder %s12, 1
    %p29 = por %p27, %p28
    %p30 = scmp.ne.s32.totalorder %s22, %s25
    %p31 = scmp.eq.s32.totalorder %s12, 0
    %p32 = por %p30, %p31
    %p33 = scmp.ne.s32.totalorder %s22, %s25
    %p34 = scmp.eq.s32.totalorder %s17, 1
    %p35 = por %p33, %p34
    %p36 = scmp.ne.s32.totalorder %s25, %s26
    %p37 = scmp.eq.s32.totalorder %s17, 0
    %p38 = por %p36, %p37
    %p39 = scmp.ne.s32.totalorder %s25, %s26
    %p40 = scmp.eq.s32.totalorder %s18, 1
    %p41 = por %p39, %p40
    %p43 = scmp.ne.s32.totalorder %s26, %s42
    %p44 = scmp.eq.s32.totalorder %s18, 0
    %p45 = por %p43, %p44
    %s47 = sadd.s32 %s46, 1
    %p50 = scmp.eq.s32.totalorder %s12, 1
    %p51 = scmp.ne.s32.totalorder %s46, %s48
    %p52 = scmp.eq.s32.totalorder %s12, 0
    %p53 = por %p51, %p52
    %p54 = scmp.ne.s32.totalorder %s46, %s48
    %p55 = scmp.eq.s32.totalorder %s17, 1
    %p56 = por %p54, %p55
    %p57 = scmp.ne.s32.totalorder %s48, %s49
    %p58 = scmp.eq.s32.totalorder %s17, 0
    %p59 = por %p57, %p58
    %p60 = scmp.ne.s32.totalorder %s48, %s49
    %p61 = scmp.eq.s32.totalorder %s18, 1
    %p62 = por %p60, %p61
    %p64 = scmp.ne.s32.totalorder %s49, %s63
    %p65 = scmp.eq.s32.totalorder %s18, 0
    %p66 = por %p64, %p65
    %s68 = sadd.s32 %s67, 1
    %p71 = scmp.eq.s32.totalorder %s12, 1
    %p72 = scmp.ne.s32.totalorder %s67, %s69
    %p73 = scmp.eq.s32.totalorder %s12, 0
    %p74 = por %p72, %p73
    %p75 = scmp.ne.s32.totalorder %s67, %s69
    %p76 = scmp.eq.s32.totalorder %s17, 1
    %p77 = por %p75, %p76
    %p78 = scmp.ne.s32.totalorder %s69, %s70
    %p79 = scmp.eq.s32.totalorder %s17, 0
    %p80 = por %p78, %p79
    %p81 = scmp.ne.s32.totalorder %s69, %s70
    %p82 = scmp.eq.s32.totalorder %s18, 1
    %p83 = por %p81, %p82
    %p85 = scmp.ne.s32.totalorder %s70, %s84
    %p86 = scmp.eq.s32.totalorder %s18, 0
    %p87 = por %p85, %p86
    %s89 = sadd.s32 %s88, 1
    %p92 = scmp.eq.s32.totalorder %s12, 1
    %p93 = scmp.ne.s32.totalorder %s88, %s90
    %p94 = scmp.eq.s32.totalorder %s12, 0
    %p95 = por %p93, %p94
    %p96 = scmp.ne.s32.totalorder %s88, %s90
    %p97 = scmp.eq.s32.totalorder %s17, 1
    %p98 = por %p96, %p97
    %p99 = scmp.ne.s32.totalorder %s90, %s91
    %p100 = scmp.eq.s32.totalorder %s17, 0
    %p101 = por %p99, %p100
    %p102 = scmp.ne.s32.totalorder %s90, %s91
    %p103 = scmp.eq.s32.totalorder %s18, 1
    %p104 = por %p102, %p103
    %p106 = scmp.ne.s32.totalorder %s91, %s105
    %p107 = scmp.eq.s32.totalorder %s18, 0
    %p108 = por %p106, %p107
    %s110 = sadd.s32 %s109, 1
    %p113 = scmp.eq.s32.totalorder %s12, 1
    %p114 = scmp.ne.s32.totalorder %s109, %s111
    %p115 = scmp.eq.s32.totalorder %s12, 0
    %p116 = por %p114, %p115
    %p117 = scmp.ne.s32.totalorder %s109, %s111
    %p118 = scmp.eq.s32.totalorder %s17, 1
    %p119 = por %p117, %p118
    %p120 = scmp.ne.s32.totalorder %s111, %s112
    %p121 = scmp.eq.s32.totalorder %s17, 0
    %p122 = por %p120, %p121
    %p123 = scmp.ne.s32.totalorder %s111, %s112
    %p124 = scmp.eq.s32.totalorder %s18, 1
    %p125 = por %p123, %p124
    %p127 = scmp.ne.s32.totalorder %s112, %s126
    %p128 = scmp.eq.s32.totalorder %s18, 0
    %p129 = por %p127, %p128
    %s131 = sadd.s32 %s130, 1
    %p134 = scmp.eq.s32.totalorder %s12, 1
    %p135 = scmp.ne.s32.totalorder %s130, %s132
    %p136 = scmp.eq.s32.totalorder %s12, 0
    %p137 = por %p135, %p136
    %p138 = scmp.ne.s32.totalorder %s130, %s132
    %p139 = scmp.eq.s32.totalorder %s17, 1
    %p140 = por %p138, %p139
    %p141 = scmp.ne.s32.totalorder %s132, %s133
    %p142 = scmp.eq.s32.totalorder %s17, 0
    %p143 = por %p141, %p142
    %p144 = scmp.ne.s32.totalorder %s132, %s133
    %p145 = scmp.eq.s32.totalorder %s18, 1
    %p146 = por %p144, %p145
    %p148 = scmp.ne.s32.totalorder %s133, %s147
    %p149 = scmp.eq.s32.totalorder %s18, 0
    %p150 = por %p148, %p149
    %s151 = ssub.s32 %s12, %s19
    %p152 = scmp.eq.s32.totalorder %s151, 0
    %s154 = sadd.s32 %s153, 1
    %s155 = scalar_select %p152, %s153, %s154
    %p158 = pneg %p152
    %p159 = scmp.eq.s32.totalorder %s12, 1
    %p160 = por %p158, %p159
    %p161 = scmp.ne.s32.totalorder %s153, %s156
    %p162 = scmp.eq.s32.totalorder %s12, 0
    %p163 = por %p161, %p162
    %p164 = scmp.ne.s32.totalorder %s153, %s156
    %p165 = scmp.eq.s32.totalorder %s17, 1
    %p166 = por %p164, %p165
    %p167 = scmp.ne.s32.totalorder %s156, %s157
    %p168 = scmp.eq.s32.totalorder %s17, 0
    %p169 = por %p167, %p168
    %p170 = scmp.ne.s32.totalorder %s156, %s157
    %p171 = scmp.eq.s32.totalorder %s18, 1
    %p172 = por %p170, %p171
    %p174 = scmp.ne.s32.totalorder %s157, %s173
    %p175 = scmp.eq.s32.totalorder %s18, 0
    %p176 = por %p174, %p175
    %p177 = scmp.le.s32.totalorder 1, %s12
    %p178 = scmp.lt.s32.totalorder %s12, 3
    %p179 = pnand %p177, %p178
    %p180 = pneg %p179
    // Predicated region
    $region9: #{tpu_custom_call.1} parent=5 // pred_check
      _
    $region10: #{tpu_custom_call.1} parent=5 // pred_check_branch
      %182 = sbr.rel (%p179) target = $region12
    $region11: #{tpu_custom_call.1} parent=5 // pred_region
      %s183 = ssub.s32 %s12, 1
      // Predicated region
      $region13: #{tpu_custom_call.1} parent=11 // pred_check
        %p184 = pneg %p59
      $region14: #{tpu_custom_call.1} parent=11 // pred_check_branch
        %186 = sbr.rel (%p184) target = $region16
      $region15: #{tpu_custom_call.1} parent=11 // pred_region
        _
      $region16: #{tpu_custom_call.1} parent=11 // pred_fallthru
        _
      // Predicated region
      $region17: #{tpu_custom_call.1} parent=11 // pred_check
        %p187 = pneg %p80
      $region18: #{tpu_custom_call.1} parent=11 // pred_check_branch
        %189 = sbr.rel (%p187) target = $region20
      $region19: #{tpu_custom_call.1} parent=11 // pred_region
        _
      $region20: #{tpu_custom_call.1} parent=11 // pred_fallthru
        _
      // Predicated region
      $region21: #{tpu_custom_call.1} parent=11 // pred_check
        %p190 = pneg %p101
      $region22: #{tpu_custom_call.1} parent=11 // pred_check_branch
        %192 = sbr.rel (%p190) target = $region24
      $region23: #{tpu_custom_call.1} parent=11 // pred_region
        _
      $region24: #{tpu_custom_call.1} parent=11 // pred_fallthru
        _
      // Predicated region
      $region25: #{tpu_custom_call.1} parent=11 // pred_check
        %p193 = pneg %p122
      $region26: #{tpu_custom_call.1} parent=11 // pred_check_branch
        %195 = sbr.rel (%p193) target = $region28
      $region27: #{tpu_custom_call.1} parent=11 // pred_region
        _
      $region28: #{tpu_custom_call.1} parent=11 // pred_fallthru
        _
      // Predicated region
      $region29: #{tpu_custom_call.1} parent=11 // pred_check
        %p196 = pneg %p143
      $region30: #{tpu_custom_call.1} parent=11 // pred_check_branch
        %198 = sbr.rel (%p196) target = $region32
      $region31: #{tpu_custom_call.1} parent=11 // pred_region
        _
      $region32: #{tpu_custom_call.1} parent=11 // pred_fallthru
        _
    $region12: #{tpu_custom_call.1} parent=5 // pred_fallthru
      _
    %p199 = scmp.lt.s32.totalorder %s12, 2
    // Predicated region
    $region33: #{tpu_custom_call.1} parent=5 // pred_check
      %p200 = pneg %p199
    $region34: #{tpu_custom_call.1} parent=5 // pred_check_branch
      %202 = sbr.rel (%p200) target = $region36
    $region35: #{tpu_custom_call.1} parent=5 // pred_region
      // Predicated region
      $region37: #{tpu_custom_call.1} parent=35 // pred_check
        %p203 = pneg %p32
      $region38: #{tpu_custom_call.1} parent=35 // pred_check_branch
        %205 = sbr.rel (%p203) target = $region40
      $region39: #{tpu_custom_call.1} parent=35 // pred_region
        %p206 = scmp.lt.s32.totalorder %s12, 1
        %s207 = scalar_select %p206, %s12, 1
        %s208 = smul.addr %s207, 2
        %s209 = smul.addr %s208, 8
        %s210 = scalar_lea.vmem %s0, %s209
      $region40: #{tpu_custom_call.1} parent=35 // pred_fallthru
        _
    $region36: #{tpu_custom_call.1} parent=5 // pred_fallthru
      _
    %p211 = scmp.le.s32.totalorder 1, %s12
    %p212 = scmp.lt.s32.totalorder %s12, 3
    %p213 = pnand %p211, %p212
    %p214 = pneg %p213
    // Predicated region
    $region41: #{tpu_custom_call.1} parent=5 // pred_check
      _
    $region42: #{tpu_custom_call.1} parent=5 // pred_check_branch
      %216 = sbr.rel (%p213) target = $region44
    $region43: #{tpu_custom_call.1} parent=5 // pred_region
      %s217 = ssub.s32 %s12, 1
      %p218 = scmp.lt.s32.totalorder %s17, 1
      %s219 = scalar_select %p218, %s17, 1
      %s220 = smul.addr %s219, 2
      %s221 = smul.addr %s220, 8
      %s222 = scalar_lea.vmem %s0, %s221
      %p223 = pneg %p38
      %p224 = pneg %p35
      %p225 = pneg %p59
      %p226 = pneg %p56
      %p227 = pneg %p80
      %p228 = pneg %p77
      %p229 = pneg %p101
      %p230 = pneg %p98
      %p231 = pneg %p122
      %p232 = pneg %p119
      %p233 = pneg %p143
      %p234 = pneg %p140
      %p235 = pneg %p169
      %p236 = pneg %p166
      %p237 = scmp.lt.s32.totalorder %s17, 1
      %s238 = scalar_select %p237, %s17, 1
      %s239 = smul.addr %s238, 3
      %s240 = smul.addr %s239, 8
      %s241 = scalar_lea.vmem %s6, %s240
      %p242 = scmp.lt.s32.totalorder %s17, 1
      %s243 = scalar_select %p242, %s17, 1
      %s244 = smul.addr %s243, 2
      %s245 = smul.addr %s244, 8
      %s246 = scalar_lea.vmem %s0, %s245
      %p247 = scmp.lt.s32.totalorder %s17, 1
      %s248 = scalar_select %p247, %s17, 1
      %s249 = smul.addr %s248, 3
      %s250 = smul.addr %s249, 8
      %s251 = scalar_lea.vmem %s6, %s250
      %v252 = vld [vmem:[%s246] sm:$0xff]
      %v253 = vld [vmem:[%s246 + $0x8] sm:$0xff]
      %v254 = vld [vmem:[%s1] sm:$0xff]
      %v255 = vld [vmem:[%s1 + $0x8] sm:$0xff]
      %v256 = vld [vmem:[%s1 + $0x10] sm:$0xff]
      %v257 = vld [vmem:[%s1 + $0x18] sm:$0xff]
      %v258 = vld [vmem:[%s2] sm:$0x1]
      %v260 = vlaneseq
      %v261 = vshrl.u32 %v260, 7
      %v262 = vsub.s32 0, %v261
      %v263 = vrot.slane %v258, %v262
      %vm265 = vcmask 261120
      %v267 = vsel %vm265, %v252, 0
      %v270 = vsel %vm265, %v253, 0
      %272 = vmatprep.subr.mxu0 0.0
      %273 = vmatpush1.msra.mxu0 %v254
      %274 = vmatprep.subr.mxu0 0.0
      %275 = vmatpush1.msra.mxu0 %v255
      %276 = vmatprep.subr.mxu0 0.0
      %277 = vmatpush1.msra.mxu0 %v256
      %278 = vmatprep.subr.mxu0 0.0
      %279 = vmatpush1.msra.mxu0 %v257
      %280 = vmatprep.subr.mxu0 0.0
      %281 = vmatpush1.msra.mxu0 0.0
      %282 = vmatprep.subr.mxu0 0.0
      %283 = vmatpush1.msra.mxu0 0.0
      %284 = vmatprep.subr.mxu0 0.0
      %285 = vmatpush1.msra.mxu0 0.0
      %286 = vmatprep.subr.mxu0 0.0
      %287 = vmatpush1.msra.mxu0 0.0
      %288 = vmatprep.subr.mxu0 0.0
      %289 = vmatpush1.msra.mxu0 0.0
      %290 = vmatprep.subr.mxu0 0.0
      %291 = vmatpush1.msra.mxu0 0.0
      %292 = vmatprep.subr.mxu0 0.0
      %293 = vmatpush1.msra.mxu0 0.0
      %294 = vmatprep.subr.mxu0 0.0
      %295 = vmatpush1.msra.mxu0 0.0
      %296 = vmatprep.subr.mxu0 0.0
      %297 = vmatpush1.msra.mxu0 0.0
      %298 = vmatprep.subr.mxu0 0.0
      %299 = vmatpush1.msra.mxu0 0.0
      %300 = vmatprep.subr.mxu0 0.0
      %301 = vmatpush1.msra.mxu0 0.0
      %302 = vmatprep.subr.mxu0 0.0
      %303 = vmatpush1.msra.mxu0 0.0
      %304 = vmatprep.subr.mxu0 0.0
      %305 = vmatpush1.msra.mxu0 0.0
      %306 = vmatprep.subr.mxu0 0.0
      %307 = vmatpush1.msra.mxu0 0.0
      %308 = vmatprep.subr.mxu0 0.0
      %309 = vmatpush1.msra.mxu0 0.0
      %310 = vmatprep.subr.mxu0 0.0
      %311 = vmatpush1.msra.mxu0 0.0
      %312 = vmatprep.subr.mxu0 0.0
      %313 = vmatpush1.msra.mxu0 0.0
      %314 = vmatprep.subr.mxu0 0.0
      %315 = vmatpush1.msra.mxu0 0.0
      %316 = vmatprep.subr.mxu0 0.0
      %317 = vmatpush1.msra.mxu0 0.0
      %318 = vmatprep.subr.mxu0 0.0
      %319 = vmatpush1.msra.mxu0 0.0
      %320 = vmatprep.subr.mxu0 0.0
      %321 = vmatpush1.msra.mxu0 0.0
      %322 = vmatprep.subr.mxu0 0.0
      %323 = vmatpush1.msra.mxu0 0.0
      %324 = vmatprep.subr.mxu0 0.0
      %325 = vmatpush1.msra.mxu0 0.0
      %326 = vmatprep.subr.mxu0 0.0
      %327 = vmatpush1.msra.mxu0 0.0
      %328 = vmatprep.subr.mxu0 0.0
      %329 = vmatpush1.msra.mxu0 0.0
      %330 = vmatprep.subr.mxu0 0.0
      %331 = vmatpush1.msra.mxu0 0.0
      %332 = vmatprep.subr.mxu0 0.0
      %333 = vmatpush1.msra.mxu0 0.0
      %334 = vmatprep.subr.mxu0 0.0
      %335 = vmatpush1.msra.mxu0 0.0
      %336 = vmatprep.mubr.f32.mxu0 0.0
      %337 = vmatmul.mubr.f32.gmra.mrb[0].mxu0 %v267
      %v338 = vpop.f32.mrb[0].mxu0
      %v339 = vadd.f32 %v263, %v338
      %v340 = vpop.f32.mrb[0].mxu0
      %341 = vmatprep.mubr.f32.mxu0 0.0
      %342 = vmatmul.mubr.f32.gmra.mrb[0].mxu0 %v270
      %v343 = vpop.f32.mrb[0].mxu0
      %v344 = vadd.f32 %v263, %v343
      %v345 = vpop.f32.mrb[0].mxu0
      %346 = vdwg.mxu0
      %v347 = vmax.f32 %v339, 0.0
      %v348 = vmax.f32 %v344, 0.0
      %349 = vrot.lane.b32.xlu0 %v252, 96
      %v350 = vpop.permute.xlu0 %349
      %351 = vrot.lane.b32.xlu0 %v253, 96
      %v352 = vpop.permute.xlu0 %351
      %v353 = vsel %vm265, %v350, 0
      %v355 = vsel %vm265, %v352, 0
      %357 = vmatprep.subr.mxu0 0.0
      %358 = vmatpush1.msra.mxu0 %v254
      %359 = vmatprep.subr.mxu0 0.0
      %360 = vmatpush1.msra.mxu0 %v255
      %361 = vmatprep.subr.mxu0 0.0
      %362 = vmatpush1.msra.mxu0 %v256
      %363 = vmatprep.subr.mxu0 0.0
      %364 = vmatpush1.msra.mxu0 %v257
      %365 = vmatprep.subr.mxu0 0.0
      %366 = vmatpush1.msra.mxu0 0.0
      %367 = vmatprep.subr.mxu0 0.0
      %368 = vmatpush1.msra.mxu0 0.0
      %369 = vmatprep.subr.mxu0 0.0
      %370 = vmatpush1.msra.mxu0 0.0
      %371 = vmatprep.subr.mxu0 0.0
      %372 = vmatpush1.msra.mxu0 0.0
      %373 = vmatprep.subr.mxu0 0.0
      %374 = vmatpush1.msra.mxu0 0.0
      %375 = vmatprep.subr.mxu0 0.0
      %376 = vmatpush1.msra.mxu0 0.0
      %377 = vmatprep.subr.mxu0 0.0
      %378 = vmatpush1.msra.mxu0 0.0
      %379 = vmatprep.subr.mxu0 0.0
      %380 = vmatpush1.msra.mxu0 0.0
      %381 = vmatprep.subr.mxu0 0.0
      %382 = vmatpush1.msra.mxu0 0.0
      %383 = vmatprep.subr.mxu0 0.0
      %384 = vmatpush1.msra.mxu0 0.0
      %385 = vmatprep.subr.mxu0 0.0
      %386 = vmatpush1.msra.mxu0 0.0
      %387 = vmatprep.subr.mxu0 0.0
      %388 = vmatpush1.msra.mxu0 0.0
      %389 = vmatprep.subr.mxu0 0.0
      %390 = vmatpush1.msra.mxu0 0.0
      %391 = vmatprep.subr.mxu0 0.0
      %392 = vmatpush1.msra.mxu0 0.0
      %393 = vmatprep.subr.mxu0 0.0
      %394 = vmatpush1.msra.mxu0 0.0
      %395 = vmatprep.subr.mxu0 0.0
      %396 = vmatpush1.msra.mxu0 0.0
      %397 = vmatprep.subr.mxu0 0.0
      %398 = vmatpush1.msra.mxu0 0.0
      %399 = vmatprep.subr.mxu0 0.0
      %400 = vmatpush1.msra.mxu0 0.0
      %401 = vmatprep.subr.mxu0 0.0
      %402 = vmatpush1.msra.mxu0 0.0
      %403 = vmatprep.subr.mxu0 0.0
      %404 = vmatpush1.msra.mxu0 0.0
      %405 = vmatprep.subr.mxu0 0.0
      %406 = vmatpush1.msra.mxu0 0.0
      %407 = vmatprep.subr.mxu0 0.0
      %408 = vmatpush1.msra.mxu0 0.0
      %409 = vmatprep.subr.mxu0 0.0
      %410 = vmatpush1.msra.mxu0 0.0
      %411 = vmatprep.subr.mxu0 0.0
      %412 = vmatpush1.msra.mxu0 0.0
      %413 = vmatprep.subr.mxu0 0.0
      %414 = vmatpush1.msra.mxu0 0.0
      %415 = vmatprep.subr.mxu0 0.0
      %416 = vmatpush1.msra.mxu0 0.0
      %417 = vmatprep.subr.mxu0 0.0
      %418 = vmatpush1.msra.mxu0 0.0
      %419 = vmatprep.subr.mxu0 0.0
      %420 = vmatpush1.msra.mxu0 0.0
      %421 = vmatprep.mubr.f32.mxu0 0.0
      %422 = vmatmul.mubr.f32.gmra.mrb[0].mxu0 %v353
      %v423 = vpop.f32.mrb[0].mxu0
      %v424 = vadd.f32 %v263, %v423
      %v425 = vpop.f32.mrb[0].mxu0
      %426 = vmatprep.mubr.f32.mxu0 0.0
      %427 = vmatmul.mubr.f32.gmra.mrb[0].mxu0 %v355
      %v428 = vpop.f32.mrb[0].mxu0
      %v429 = vadd.f32 %v263, %v428
      %v430 = vpop.f32.mrb[0].mxu0
      %431 = vdwg.mxu0
      %v432 = vmax.f32 %v424, 0.0
      %v433 = vmax.f32 %v429, 0.0
      %434 = vrot.lane.b32.xlu0 %v252, 64
      %v435 = vpop.permute.xlu0 %434
      %436 = vrot.lane.b32.xlu0 %v253, 64
      %v437 = vpop.permute.xlu0 %436
      %v438 = vsel %vm265, %v435, 0
      %v440 = vsel %vm265, %v437, 0
      %442 = vmatprep.subr.mxu0 0.0
      %443 = vmatpush1.msra.mxu0 %v254
      %444 = vmatprep.subr.mxu0 0.0
      %445 = vmatpush1.msra.mxu0 %v255
      %446 = vmatprep.subr.mxu0 0.0
      %447 = vmatpush1.msra.mxu0 %v256
      %448 = vmatprep.subr.mxu0 0.0
      %449 = vmatpush1.msra.mxu0 %v257
      %450 = vmatprep.subr.mxu0 0.0
      %451 = vmatpush1.msra.mxu0 0.0
      %452 = vmatprep.subr.mxu0 0.0
      %453 = vmatpush1.msra.mxu0 0.0
      %454 = vmatprep.subr.mxu0 0.0
      %455 = vmatpush1.msra.mxu0 0.0
      %456 = vmatprep.subr.mxu0 0.0
      %457 = vmatpush1.msra.mxu0 0.0
      %458 = vmatprep.subr.mxu0 0.0
      %459 = vmatpush1.msra.mxu0 0.0
      %460 = vmatprep.subr.mxu0 0.0
      %461 = vmatpush1.msra.mxu0 0.0
      %462 = vmatprep.subr.mxu0 0.0
      %463 = vmatpush1.msra.mxu0 0.0
      %464 = vmatprep.subr.mxu0 0.0
      %465 = vmatpush1.msra.mxu0 0.0
      %466 = vmatprep.subr.mxu0 0.0
      %467 = vmatpush1.msra.mxu0 0.0
      %468 = vmatprep.subr.mxu0 0.0
      %469 = vmatpush1.msra.mxu0 0.0
      %470 = vmatprep.subr.mxu0 0.0
      %471 = vmatpush1.msra.mxu0 0.0
      %472 = vmatprep.subr.mxu0 0.0
      %473 = vmatpush1.msra.mxu0 0.0
      %474 = vmatprep.subr.mxu0 0.0
      %475 = vmatpush1.msra.mxu0 0.0
      %476 = vmatprep.subr.mxu0 0.0
      %477 = vmatpush1.msra.mxu0 0.0
      %478 = vmatprep.subr.mxu0 0.0
      %479 = vmatpush1.msra.mxu0 0.0
      %480 = vmatprep.subr.mxu0 0.0
      %481 = vmatpush1.msra.mxu0 0.0
      %482 = vmatprep.subr.mxu0 0.0
      %483 = vmatpush1.msra.mxu0 0.0
      %484 = vmatprep.subr.mxu0 0.0
      %485 = vmatpush1.msra.mxu0 0.0
      %486 = vmatprep.subr.mxu0 0.0
      %487 = vmatpush1.msra.mxu0 0.0
      %488 = vmatprep.subr.mxu0 0.0
      %489 = vmatpush1.msra.mxu0 0.0
      %490 = vmatprep.subr.mxu0 0.0
      %491 = vmatpush1.msra.mxu0 0.0
      %492 = vmatprep.subr.mxu0 0.0
      %493 = vmatpush1.msra.mxu0 0.0
      %494 = vmatprep.subr.mxu0 0.0
      %495 = vmatpush1.msra.mxu0 0.0
      %496 = vmatprep.subr.mxu0 0.0
      %497 = vmatpush1.msra.mxu0 0.0
      %498 = vmatprep.subr.mxu0 0.0
      %499 = vmatpush1.msra.mxu0 0.0
      %500 = vmatprep.subr.mxu0 0.0
      %501 = vmatpush1.msra.mxu0 0.0
      %502 = vmatprep.subr.mxu0 0.0
      %503 = vmatpush1.msra.mxu0 0.0
      %504 = vmatprep.subr.mxu0 0.0
      %505 = vmatpush1.msra.mxu0 0.0
      %506 = vmatprep.mubr.f32.mxu0 0.0
      %507 = vmatmul.mubr.f32.gmra.mrb[0].mxu0 %v438
      %v508 = vpop.f32.mrb[0].mxu0
      %v509 = vadd.f32 %v263, %v508
      %v510 = vpop.f32.mrb[0].mxu0
      %511 = vmatprep.mubr.f32.mxu0 0.0
      %512 = vmatmul.mubr.f32.gmra.mrb[0].mxu0 %v440
      %v513 = vpop.f32.mrb[0].mxu0
      %v514 = vadd.f32 %v263, %v513
      %v515 = vpop.f32.mrb[0].mxu0
      %516 = vdwg.mxu0
      %v517 = vmax.f32 %v509, 0.0
      %v518 = vmax.f32 %v514, 0.0
      %519 = vrot.lane.b32.xlu0 %v252, 32
      %v520 = vpop.permute.xlu0 %519
      %521 = vrot.lane.b32.xlu0 %v253, 32
      %v522 = vpop.permute.xlu0 %521
      %v523 = vsel %vm265, %v520, 0
      %v525 = vsel %vm265, %v522, 0
      %527 = vmatprep.subr.mxu0 0.0
      %528 = vmatpush1.msra.mxu0 %v254
      %529 = vmatprep.subr.mxu0 0.0
      %530 = vmatpush1.msra.mxu0 %v255
      %531 = vmatprep.subr.mxu0 0.0
      %532 = vmatpush1.msra.mxu0 %v256
      %533 = vmatprep.subr.mxu0 0.0
      %534 = vmatpush1.msra.mxu0 %v257
      %535 = vmatprep.subr.mxu0 0.0
      %536 = vmatpush1.msra.mxu0 0.0
      %537 = vmatprep.subr.mxu0 0.0
      %538 = vmatpush1.msra.mxu0 0.0
      %539 = vmatprep.subr.mxu0 0.0
      %540 = vmatpush1.msra.mxu0 0.0
      %541 = vmatprep.subr.mxu0 0.0
      %542 = vmatpush1.msra.mxu0 0.0
      %543 = vmatprep.subr.mxu0 0.0
      %544 = vmatpush1.msra.mxu0 0.0
      %545 = vmatprep.subr.mxu0 0.0
      %546 = vmatpush1.msra.mxu0 0.0
      %547 = vmatprep.subr.mxu0 0.0
      %548 = vmatpush1.msra.mxu0 0.0
      %549 = vmatprep.subr.mxu0 0.0
      %550 = vmatpush1.msra.mxu0 0.0
      %551 = vmatprep.subr.mxu0 0.0
      %552 = vmatpush1.msra.mxu0 0.0
      %553 = vmatprep.subr.mxu0 0.0
      %554 = vmatpush1.msra.mxu0 0.0
      %555 = vmatprep.subr.mxu0 0.0
      %556 = vmatpush1.msra.mxu0 0.0
      %557 = vmatprep.subr.mxu0 0.0
      %558 = vmatpush1.msra.mxu0 0.0
      %559 = vmatprep.subr.mxu0 0.0
      %560 = vmatpush1.msra.mxu0 0.0
      %561 = vmatprep.subr.mxu0 0.0
      %562 = vmatpush1.msra.mxu0 0.0
      %563 = vmatprep.subr.mxu0 0.0
      %564 = vmatpush1.msra.mxu0 0.0
      %565 = vmatprep.subr.mxu0 0.0
      %566 = vmatpush1.msra.mxu0 0.0
      %567 = vmatprep.subr.mxu0 0.0
      %568 = vmatpush1.msra.mxu0 0.0
      %569 = vmatprep.subr.mxu0 0.0
      %570 = vmatpush1.msra.mxu0 0.0
      %571 = vmatprep.subr.mxu0 0.0
      %572 = vmatpush1.msra.mxu0 0.0
      %573 = vmatprep.subr.mxu0 0.0
      %574 = vmatpush1.msra.mxu0 0.0
      %575 = vmatprep.subr.mxu0 0.0
      %576 = vmatpush1.msra.mxu0 0.0
      %577 = vmatprep.subr.mxu0 0.0
      %578 = vmatpush1.msra.mxu0 0.0
      %579 = vmatprep.subr.mxu0 0.0
      %580 = vmatpush1.msra.mxu0 0.0
      %581 = vmatprep.subr.mxu0 0.0
      %582 = vmatpush1.msra.mxu0 0.0
      %583 = vmatprep.subr.mxu0 0.0
      %584 = vmatpush1.msra.mxu0 0.0
      %585 = vmatprep.subr.mxu0 0.0
      %586 = vmatpush1.msra.mxu0 0.0
      %587 = vmatprep.subr.mxu0 0.0
      %588 = vmatpush1.msra.mxu0 0.0
      %589 = vmatprep.subr.mxu0 0.0
      %590 = vmatpush1.msra.mxu0 0.0
      %591 = vmatprep.mubr.f32.mxu0 0.0
      %592 = vmatmul.mubr.f32.gmra.mrb[0].mxu0 %v523
      %v593 = vpop.f32.mrb[0].mxu0
      %v594 = vadd.f32 %v263, %v593
      %v595 = vpop.f32.mrb[0].mxu0
      %596 = vmatprep.mubr.f32.mxu0 0.0
      %597 = vmatmul.mubr.f32.gmra.mrb[0].mxu0 %v525
      %v598 = vpop.f32.mrb[0].mxu0
      %v599 = vadd.f32 %v263, %v598
      %v600 = vpop.f32.mrb[0].mxu0
      %601 = vdwg.mxu0
      %v602 = vmax.f32 %v594, 0.0
      %v603 = vmax.f32 %v599, 0.0
      %606 = vrot.lane.b32.xlu0 %v432, 48
      %v607 = vpop.permute.xlu0 %606
      %608 = vrot.lane.b32.xlu0 %v433, 48
      %v609 = vpop.permute.xlu0 %608
      %614 = vrot.lane.b32.xlu0 %v517, 96
      %v615 = vpop.permute.xlu0 %614
      %616 = vrot.lane.b32.xlu0 %v518, 96
      %v617 = vpop.permute.xlu0 %616
      %622 = vrot.lane.b32.xlu0 %v602, 16
      %v623 = vpop.permute.xlu0 %622
      %624 = vrot.lane.b32.xlu0 %v603, 16
      %v625 = vpop.permute.xlu0 %624
      %vm628 = vcmask 392192
      %v629 = vsel %vm628, %v347, %v607
      %v630 = vsel %vm628, %v348, %v609
      %vm631 = vcmask 785408
      %v632 = vsel %vm631, %v629, %v615
      %v633 = vsel %vm631, %v630, %v617
      %vm634 = vcmask 130048
      %v635 = vsel %vm634, %v615, %v623
      %v636 = vsel %vm634, %v617, %v625
      %637 = vst [vmem:[#allocation2] sm:$0xff] 0.0
      %vm638 = vcmask 523264
      %639 = vst.msk [vmem:[#allocation2 + $0x8] sm:$0xff] %vm638, 0.0
      %640 = vst [vmem:[#allocation2 + $0x10] sm:$0xff] 0.0
      %641 = vst.msk [vmem:[#allocation2 + $0x18] sm:$0xff] %vm638, 0.0
      %642 = vst [vmem:[#allocation2 + $0x20] sm:$0xff] 0.0
      %643 = vst.msk [vmem:[#allocation2 + $0x28] sm:$0xff] %vm638, 0.0
      %644 = vst [vmem:[#allocation2 + $0x30] sm:$0x3f] 0.0
      %vm645 = vcmask 521216
      %646 = vst.msk [vmem:[#allocation2 + $0x38] sm:$0x3f] %vm645, 0.0
      %v649 = vrot.slane %v632, 2
      %v650 = vrot.slane %v635, 2
      %653 = vst [vmem:[#allocation2] sm:$0xc0] %v649
      %vm654 = vcmask 523270
      %655 = vst.msk [vmem:[#allocation2 + $0x8] sm:$0xc0] %vm654, %v650
      %656 = vst [vmem:[#allocation2 + $0x10] sm:$0x3] %v649
      %vm657 = vcmask 517120
      %658 = vst.msk [vmem:[#allocation2 + $0x18] sm:$0x3] %vm657, %v650
      %v659 = vrot.slane %v632, 1
      %v660 = vrot.slane %v635, 1
      %663 = vst [vmem:[#allocation2 + $0x10] sm:$0x78] %v659
      %vm664 = vcmask 522243
      %665 = vst.msk [vmem:[#allocation2 + $0x18] sm:$0x78] %vm664, %v660
      %666 = vst [vmem:[#allocation2 + $0x20] sm:$0xf] %v633
      %vm667 = vcmask 519168
      %668 = vst.msk [vmem:[#allocation2 + $0x28] sm:$0xf] %vm667, %v636
      %v671 = vrot.slane %v633, 7
      %v672 = vrot.slane %v636, 7
      %675 = vst [vmem:[#allocation2 + $0x20] sm:$0xe0] %v671
      %vm676 = vcmask 523269
      %677 = vst.msk [vmem:[#allocation2 + $0x28] sm:$0xe0] %vm676, %v672
      %678 = vst [vmem:[#allocation2 + $0x30] sm:$0x1] %v671
      %vm679 = vcmask 516096
      %680 = vst.msk [vmem:[#allocation2 + $0x38] sm:$0x1] %vm679, %v672
      %v681 = vld [vmem:[#allocation2 + $0x8] sm:$0xff]
      %v682 = vld [vmem:[#allocation2 + $0x18] sm:$0xff]
      %v683 = vld [vmem:[#allocation2 + $0x28] sm:$0xf]
      %v684 = vld [vmem:[#allocation2] sm:$0xfe]
      %v685 = vld [vmem:[#allocation2 + $0x8] sm:$0xfe]
      %v686 = vld [vmem:[#allocation2 + $0x10] sm:$0xff]
      %v687 = vld [vmem:[#allocation2 + $0x20] sm:$0x1f]
      %v688 = vld [vmem:[#allocation2 + $0x28] sm:$0x1f]
      %v689 = vld [vmem:[#allocation2] sm:$0xe0]
      %v690 = vld [vmem:[#allocation2 + $0x20] sm:$0xff]
      %v691 = vld [vmem:[#allocation2 + $0x30] sm:$0x1]
      %v692 = vld [vmem:[#allocation2] sm:$0xc0]
      %v693 = vld [vmem:[#allocation2 + $0x30] sm:$0x3]
      %v694 = vld [vmem:[#allocation2 + $0x8] sm:$0xe0]
      %v695 = vld [vmem:[#allocation2 + $0x28] sm:$0xff]
      %v696 = vld [vmem:[#allocation2 + $0x38] sm:$0x1]
      %v697 = vld [vmem:[#allocation2 + $0x8] sm:$0xc0]
      %v698 = vld [vmem:[#allocation2 + $0x38] sm:$0x3]
      %702 = vrot.lane.b32.xlu0 %v681, 112
      %v703 = vpop.permute.xlu0 %702
      %704 = vrot.lane.b32.xlu0 %v682, 112
      %v705 = vpop.permute.xlu0 %704
      %706 = vrot.lane.b32.xlu0 %v683, 112
      %v707 = vpop.permute.xlu0 %706
      %vm716 = vcmask 1046528
      %v717 = vrot.slane %v684, 1
      %v718 = vrot.slane %v686, 1
      %v719 = vsel %vm716, %v717, %v718
      %v720 = vrot.slane %v685, 1
      %v721 = vrot.slane %v682, 1
      %v722 = vsel %vm716, %v720, %v721
      %v723 = vrot.slane %v687, 1
      %v724 = vsel %vm716, %v718, %v723
      %v725 = vrot.slane %v688, 1
      %v726 = vsel %vm716, %v721, %v725
      %727 = vrot.lane.b32.xlu0 %v719, 80
      %v728 = vpop.permute.xlu0 %727
      %729 = vrot.lane.b32.xlu0 %v722, 80
      %v730 = vpop.permute.xlu0 %729
      %731 = vrot.lane.b32.xlu0 %v724, 80
      %v732 = vpop.permute.xlu0 %731
      %733 = vrot.lane.b32.xlu0 %v726, 80
      %v734 = vpop.permute.xlu0 %733
      %735 = vrot.lane.b32.xlu0 %v723, 80
      %v736 = vpop.permute.xlu0 %735
      %737 = vrot.lane.b32.xlu0 %v725, 80
      %v738 = vpop.permute.xlu0 %737
      %vm739 = vcmask 654336
      %v740 = vsel %vm739, %v728, %v730
      %v741 = vsel %vm739, %v732, %v734
      %v742 = vsel %vm739, %v736, %v738
      %vm752 = vcmask 1042432
      %v753 = vrot.slane %v689, 5
      %v754 = vrot.slane %v686, 5
      %v755 = vsel %vm752, %v753, %v754
      %v756 = vrot.slane %v690, 5
      %v757 = vsel %vm752, %v754, %v756
      %v758 = vrot.slane %v691, 5
      %v759 = vsel %vm752, %v756, %v758
      %760 = vrot.lane.b32.xlu0 %v755, 96
      %v761 = vpop.permute.xlu0 %760
      %762 = vrot.lane.b32.xlu0 %v757, 96
      %v763 = vpop.permute.xlu0 %762
      %764 = vrot.lane.b32.xlu0 %v759, 96
      %v765 = vpop.permute.xlu0 %764
      %vm771 = vcmask 1041408
      %v772 = vrot.slane %v692, 6
      %v773 = vrot.slane %v686, 6
      %v774 = vsel %vm771, %v772, %v773
      %v775 = vrot.slane %v690, 6
      %v776 = vsel %vm771, %v773, %v775
      %v777 = vrot.slane %v693, 6
      %v778 = vsel %vm771, %v775, %v777
      %779 = vrot.lane.b32.xlu0 %v774, 64
      %v780 = vpop.permute.xlu0 %779
      %781 = vrot.lane.b32.xlu0 %v776, 64
      %v782 = vpop.permute.xlu0 %781
      %783 = vrot.lane.b32.xlu0 %v778, 64
      %v784 = vpop.permute.xlu0 %783
      %v791 = vrot.slane %v694, 5
      %v792 = vrot.slane %v682, 5
      %v793 = vsel %vm752, %v791, %v792
      %v794 = vrot.slane %v695, 5
      %v795 = vsel %vm752, %v792, %v794
      %v796 = vrot.slane %v696, 5
      %v797 = vsel %vm752, %v794, %v796
      %798 = vrot.lane.b32.xlu0 %v793, 16
      %v799 = vpop.permute.xlu0 %798
      %800 = vrot.lane.b32.xlu0 %v795, 16
      %v801 = vpop.permute.xlu0 %800
      %802 = vrot.lane.b32.xlu0 %v797, 16
      %v803 = vpop.permute.xlu0 %802
      %v809 = vrot.slane %v697, 6
      %v810 = vrot.slane %v682, 6
      %v811 = vsel %vm771, %v809, %v810
      %v812 = vrot.slane %v695, 6
      %v813 = vsel %vm771, %v810, %v812
      %v814 = vrot.slane %v698, 6
      %v815 = vsel %vm771, %v812, %v814
      %816 = vrot.lane.b32.xlu0 %v774, 112
      %v817 = vpop.permute.xlu0 %816
      %818 = vrot.lane.b32.xlu0 %v811, 112
      %v819 = vpop.permute.xlu0 %818
      %820 = vrot.lane.b32.xlu0 %v776, 112
      %v821 = vpop.permute.xlu0 %820
      %822 = vrot.lane.b32.xlu0 %v813, 112
      %v823 = vpop.permute.xlu0 %822
      %824 = vrot.lane.b32.xlu0 %v778, 112
      %v825 = vpop.permute.xlu0 %824
      %826 = vrot.lane.b32.xlu0 %v815, 112
      %v827 = vpop.permute.xlu0 %826
      %vm828 = vcmask 916480
      %v829 = vsel %vm828, %v817, %v819
      %v830 = vsel %vm828, %v821, %v823
      %v831 = vsel %vm828, %v825, %v827
      %v835 = vsel %vm628, %v703, %v740
      %v836 = vsel %vm628, %v705, %v741
      %v837 = vsel %vm628, %v707, %v742
      %v838 = vsel %vm631, %v835, %v730
      %v839 = vsel %vm631, %v836, %v734
      %v840 = vsel %vm631, %v837, %v738
      %v841 = vsel %vm634, %v730, %v761
      %v842 = vsel %vm634, %v734, %v763
      %v843 = vsel %vm634, %v738, %v765
      %v844 = vsel %vm638, %v841, %v780
      %v845 = vsel %vm638, %v842, %v782
      %v846 = vsel %vm638, %v843, %v784
      %v847 = vsel %vm828, %v844, %v780
      %v848 = vsel %vm828, %v845, %v782
      %v849 = vsel %vm828, %v846, %v784
      %v850 = vsel %vm265, %v780, %v799
      %v851 = vsel %vm265, %v782, %v801
      %v852 = vsel %vm265, %v784, %v803
      %v853 = vsel %vm739, %v850, %v829
      %v854 = vsel %vm739, %v851, %v830
      %v855 = vsel %vm739, %v852, %v831
      %v856 = vld [vmem:[%s3] sm:$0xff]
      %v857 = vld [vmem:[%s3 + $0x8] sm:$0xff]
      %v858 = vld [vmem:[%s3 + $0x10] sm:$0xff]
      %v859 = vld [vmem:[%s3 + $0x18] sm:$0xff]
      %v860 = vld [vmem:[%s3 + $0x20] sm:$0xff]
      %v861 = vld [vmem:[%s3 + $0x28] sm:$0xff]
      %v862 = vld [vmem:[%s3 + $0x30] sm:$0xff]
      %v863 = vld [vmem:[%s3 + $0x38] sm:$0xff]
      %v864 = vld [vmem:[%s3 + $0x40] sm:$0xff]
      %v865 = vld [vmem:[%s3 + $0x48] sm:$0xff]
      %v866 = vld [vmem:[%s3 + $0x50] sm:$0xff]
      %v867 = vld [vmem:[%s3 + $0x58] sm:$0xff]
      %v868 = vld [vmem:[%s3 + $0x60] sm:$0xff]
      %v869 = vld [vmem:[%s3 + $0x68] sm:$0xff]
      %v870 = vld [vmem:[%s3 + $0x70] sm:$0xff]
      %v871 = vld [vmem:[%s3 + $0x78] sm:$0xff]
      %v872 = vld [vmem:[%s3 + $0x80] sm:$0xff]
      %v873 = vld [vmem:[%s3 + $0x88] sm:$0xff]
      %v874 = vld [vmem:[%s3 + $0x90] sm:$0xff]
      %v875 = vld [vmem:[%s3 + $0x98] sm:$0xff]
      %v876 = vld [vmem:[%s3 + $0xa0] sm:$0xff]
      %v877 = vld [vmem:[%s3 + $0xa8] sm:$0xff]
      %v878 = vld [vmem:[%s3 + $0xb0] sm:$0xff]
      %v879 = vld [vmem:[%s3 + $0xb8] sm:$0xff]
      %v880 = vld [vmem:[%s3 + $0xc0] sm:$0xff]
      %v881 = vld [vmem:[%s3 + $0xc8] sm:$0xff]
      %v882 = vld [vmem:[%s3 + $0xd0] sm:$0xff]
      %v883 = vld [vmem:[%s3 + $0xd8] sm:$0xff]
      %v884 = vld [vmem:[%s3 + $0xe0] sm:$0xff]
      %v885 = vld [vmem:[%s3 + $0xe8] sm:$0xff]
      %v886 = vld [vmem:[%s3 + $0xf0] sm:$0xff]
      %v887 = vld [vmem:[%s3 + $0xf8] sm:$0xff]
      %v888 = vld [vmem:[%s3 + $0x100] sm:$0xff]
      %v889 = vld [vmem:[%s3 + $0x108] sm:$0xff]
      %v890 = vld [vmem:[%s3 + $0x110] sm:$0xff]
      %v891 = vld [vmem:[%s3 + $0x118] sm:$0xff]
      %v892 = vld [vmem:[%s3 + $0x120] sm:$0xff]
      %v893 = vld [vmem:[%s3 + $0x128] sm:$0xff]
      %v894 = vld [vmem:[%s3 + $0x130] sm:$0xff]
      %v895 = vld [vmem:[%s3 + $0x138] sm:$0xff]
      %v896 = vld [vmem:[%s3 + $0x140] sm:$0xff]
      %v897 = vld [vmem:[%s3 + $0x148] sm:$0xff]
      %v898 = vld [vmem:[%s3 + $0x150] sm:$0xff]
      %v899 = vld [vmem:[%s3 + $0x158] sm:$0xff]
      %v900 = vld [vmem:[%s3 + $0x160] sm:$0xff]
      %v901 = vld [vmem:[%s3 + $0x168] sm:$0xff]
      %v902 = vld [vmem:[%s3 + $0x170] sm:$0xff]
      %v903 = vld [vmem:[%s3 + $0x178] sm:$0xff]
      %v904 = vld [vmem:[%s3 + $0x180] sm:$0xff]
      %v905 = vld [vmem:[%s3 + $0x188] sm:$0xff]
      %v906 = vld [vmem:[%s3 + $0x190] sm:$0xff]
      %v907 = vld [vmem:[%s3 + $0x198] sm:$0xff]
      %v908 = vld [vmem:[%s3 + $0x1a0] sm:$0xff]
      %v909 = vld [vmem:[%s3 + $0x1a8] sm:$0xff]
      %v910 = vld [vmem:[%s4] sm:$0x1]
      %v912 = vlaneseq
      %v913 = vshrl.u32 %v912, 7
      %v914 = vsub.s32 0, %v913
      %v915 = vrot.slane %v910, %v914
      %v917 = vsel %vm628, %v819, 0
      %v919 = vsel %vm628, %v823, 0
      %v921 = vsel %vm628, %v827, 0
      %923 = vmatprep.subr.mxu0 0.0
      %924 = vmatpush1.msra.mxu0 %v856
      %925 = vmatprep.subr.mxu0 0.0
      %926 = vmatpush1.msra.mxu0 %v857
      %927 = vmatprep.subr.mxu0 0.0
      %928 = vmatpush1.msra.mxu0 %v858
      %929 = vmatprep.subr.mxu0 0.0
      %930 = vmatpush1.msra.mxu0 %v859
      %931 = vmatprep.subr.mxu0 0.0
      %932 = vmatpush1.msra.mxu0 %v860
      %933 = vmatprep.subr.mxu0 0.0
      %934 = vmatpush1.msra.mxu0 %v861
      %935 = vmatprep.subr.mxu0 0.0
      %936 = vmatpush1.msra.mxu0 %v862
      %937 = vmatprep.subr.mxu0 0.0
      %938 = vmatpush1.msra.mxu0 %v863
      %939 = vmatprep.subr.mxu0 0.0
      %940 = vmatpush1.msra.mxu0 %v864
      %941 = vmatprep.subr.mxu0 0.0
      %942 = vmatpush1.msra.mxu0 %v865
      %943 = vmatprep.subr.mxu0 0.0
      %944 = vmatpush1.msra.mxu0 %v866
      %945 = vmatprep.subr.mxu0 0.0
      %946 = vmatpush1.msra.mxu0 %v867
      %947 = vmatprep.subr.mxu0 0.0
      %948 = vmatpush1.msra.mxu0 %v868
      %949 = vmatprep.subr.mxu0 0.0
      %950 = vmatpush1.msra.mxu0 %v869
      %951 = vmatprep.subr.mxu0 0.0
      %952 = vmatpush1.msra.mxu0 %v870
      %953 = vmatprep.subr.mxu0 0.0
      %954 = vmatpush1.msra.mxu0 %v871
      %955 = vmatprep.subr.mxu0 0.0
      %956 = vmatpush1.msra.mxu0 %v872
      %957 = vmatprep.subr.mxu0 0.0
      %958 = vmatpush1.msra.mxu0 %v873
      %959 = vmatprep.subr.mxu0 0.0
      %960 = vmatpush1.msra.mxu0 %v874
      %961 = vmatprep.subr.mxu0 0.0
      %962 = vmatpush1.msra.mxu0 %v875
      %963 = vmatprep.subr.mxu0 0.0
      %964 = vmatpush1.msra.mxu0 %v876
      %965 = vmatprep.subr.mxu0 0.0
      %966 = vmatpush1.msra.mxu0 %v877
      %967 = vmatprep.subr.mxu0 0.0
      %968 = vmatpush1.msra.mxu0 %v878
      %969 = vmatprep.subr.mxu0 0.0
      %970 = vmatpush1.msra.mxu0 %v879
      %971 = vmatprep.subr.mxu0 0.0
      %972 = vmatpush1.msra.mxu0 %v880
      %973 = vmatprep.subr.mxu0 0.0
      %974 = vmatpush1.msra.mxu0 %v881
      %975 = vmatprep.subr.mxu0 0.0
      %976 = vmatpush1.msra.mxu0 %v882
      %977 = vmatprep.subr.mxu0 0.0
      %978 = vmatpush1.msra.mxu0 %v883
      %979 = vmatprep.subr.mxu0 0.0
      %980 = vmatpush1.msra.mxu0 %v884
      %981 = vmatprep.subr.mxu0 0.0
      %982 = vmatpush1.msra.mxu0 %v885
      %983 = vmatprep.subr.mxu0 0.0
      %984 = vmatpush1.msra.mxu0 %v886
      %985 = vmatprep.subr.mxu0 0.0
      %986 = vmatpush1.msra.mxu0 %v887
      %987 = vmatprep.mubr.f32.mxu0 %v847
      %988 = vmatmul.mubr.f32.gmra.mrb[0].mxu0 %v838
      %v989 = vpop.f32.mrb[0].mxu0
      %v990 = vadd.f32 %v915, %v989
      %v991 = vpop.f32.mrb[0].mxu0
      %992 = vmatprep.mubr.f32.mxu0 %v848
      %993 = vmatmul.mubr.f32.gmra.mrb[0].mxu0 %v839
      %v994 = vpop.f32.mrb[0].mxu0
      %v995 = vadd.f32 %v915, %v994
      %v996 = vpop.f32.mrb[0].mxu0
      %997 = vmatprep.mubr.f32.mxu0 %v849
      %998 = vmatmul.mubr.f32.gmra.mrb[0].mxu0 %v840
      %v999 = vpop.f32.mrb[0].mxu0
      %v1000 = vadd.f32 %v915, %v999
      %v1001 = vpop.f32.mrb[0].mxu0
      %1002 = vdwg.mxu0
      %1003 = vmatprep.subr.mxu0 0.0
      %1004 = vmatpush1.msra.mxu0 %v888
      %1005 = vmatprep.subr.mxu0 0.0
      %1006 = vmatpush1.msra.mxu0 %v889
      %1007 = vmatprep.subr.mxu0 0.0
      %1008 = vmatpush1.msra.mxu0 %v890
      %1009 = vmatprep.subr.mxu0 0.0
      %1010 = vmatpush1.msra.mxu0 %v891
      %1011 = vmatprep.subr.mxu0 0.0
      %1012 = vmatpush1.msra.mxu0 %v892
      %1013 = vmatprep.subr.mxu0 0.0
      %1014 = vmatpush1.msra.mxu0 %v893
      %1015 = vmatprep.subr.mxu0 0.0
      %1016 = vmatpush1.msra.mxu0 %v894
      %1017 = vmatprep.subr.mxu0 0.0
      %1018 = vmatpush1.msra.mxu0 %v895
      %1019 = vmatprep.subr.mxu0 0.0
      %1020 = vmatpush1.msra.mxu0 %v896
      %1021 = vmatprep.subr.mxu0 0.0
      %1022 = vmatpush1.msra.mxu0 %v897
      %1023 = vmatprep.subr.mxu0 0.0
      %1024 = vmatpush1.msra.mxu0 %v898
      %1025 = vmatprep.subr.mxu0 0.0
      %1026 = vmatpush1.msra.mxu0 %v899
      %1027 = vmatprep.subr.mxu0 0.0
      %1028 = vmatpush1.msra.mxu0 %v900
      %1029 = vmatprep.subr.mxu0 0.0
      %1030 = vmatpush1.msra.mxu0 %v901
      %1031 = vmatprep.subr.mxu0 0.0
      %1032 = vmatpush1.msra.mxu0 %v902
      %1033 = vmatprep.subr.mxu0 0.0
      %1034 = vmatpush1.msra.mxu0 %v903
      %1035 = vmatprep.subr.mxu0 0.0
      %1036 = vmatpush1.msra.mxu0 %v904
      %1037 = vmatprep.subr.mxu0 0.0
      %1038 = vmatpush1.msra.mxu0 %v905
      %1039 = vmatprep.subr.mxu0 0.0
      %1040 = vmatpush1.msra.mxu0 %v906
      %1041 = vmatprep.subr.mxu0 0.0
      %1042 = vmatpush1.msra.mxu0 %v907
      %1043 = vmatprep.subr.mxu0 0.0
      %1044 = vmatpush1.msra.mxu0 %v908
      %1045 = vmatprep.subr.mxu0 0.0
      %1046 = vmatpush1.msra.mxu0 %v909
      %1047 = vmatprep.subr.mxu0 0.0
      %1048 = vmatpush1.msra.mxu0 0.0
      %1049 = vmatprep.subr.mxu0 0.0
      %1050 = vmatpush1.msra.mxu0 0.0
      %1051 = vmatprep.subr.mxu0 0.0
      %1052 = vmatpush1.msra.mxu0 0.0
      %1053 = vmatprep.subr.mxu0 0.0
      %1054 = vmatpush1.msra.mxu0 0.0
      %1055 = vmatprep.subr.mxu0 0.0
      %1056 = vmatpush1.msra.mxu0 0.0
      %1057 = vmatprep.subr.mxu0 0.0
      %1058 = vmatpush1.msra.mxu0 0.0
      %1059 = vmatprep.subr.mxu0 0.0
      %1060 = vmatpush1.msra.mxu0 0.0
      %1061 = vmatprep.subr.mxu0 0.0
      %1062 = vmatpush1.msra.mxu0 0.0
      %1063 = vmatprep.subr.mxu0 0.0
      %1064 = vmatpush1.msra.mxu0 0.0
      %1065 = vmatprep.subr.mxu0 0.0
      %1066 = vmatpush1.msra.mxu0 0.0
      %1067 = vmatprep.mubr.f32.mxu0 %v917
      %1068 = vmatmul.mubr.f32.gmra.mrb[0].mxu0 %v853
      %v1069 = vpop.f32.mrb[0].mxu0
      %v1070 = vadd.f32 %v990, %v1069
      %v1071 = vpop.f32.mrb[0].mxu0
      %1072 = vmatprep.mubr.f32.mxu0 %v919
      %1073 = vmatmul.mubr.f32.gmra.mrb[0].mxu0 %v854
      %v1074 = vpop.f32.mrb[0].mxu0
      %v1075 = vadd.f32 %v995, %v1074
      %v1076 = vpop.f32.mrb[0].mxu0
      %1077 = vmatprep.mubr.f32.mxu0 %v921
      %1078 = vmatmul.mubr.f32.gmra.mrb[0].mxu0 %v855
      %v1079 = vpop.f32.mrb[0].mxu0
      %v1080 = vadd.f32 %v1000, %v1079
      %v1081 = vpop.f32.mrb[0].mxu0
      %1082 = vdwg.mxu0
      %v1083 = vmax.f32 %v1070, 0.0
      %v1084 = vmax.f32 %v1075, 0.0
      %v1085 = vmax.f32 %v1080, 0.0
      %1086 = vst.msk [vmem:[#allocation3] sm:$0xff] %vm628, 0.0
      %1087 = vst.msk [vmem:[#allocation3 + $0x8] sm:$0xff] %vm628, 0.0
      %1088 = vst.msk [vmem:[#allocation3 + $0x10] sm:$0xff] %vm628, 0.0
      %1089 = vst.msk [vmem:[#allocation3 + $0x18] sm:$0xff] %vm628, 0.0
      %1090 = vst.msk [vmem:[#allocation3 + $0x20] sm:$0xff] %vm628, 0.0
      %vm1091 = vcmask 386048
      %1092 = vst.msk [vmem:[#allocation3 + $0x28] sm:$0x3] %vm1091, 0.0
      %vm1093 = vcmask 388096
      %1094 = vst.msk [vmem:[#allocation3 + $0x7] sm:$0xf] %vm1093, %v1083
      %vm1095 = vcmask 392197
      %1096 = vst.msk [vmem:[#allocation3 + $0x8] sm:$0xe0] %vm1095, %v1083
      %vm1097 = vcmask 385024
      %1098 = vst.msk [vmem:[#allocation3 + $0x10] sm:$0x1] %vm1097, %v1084
      %vm1099 = vcmask 390146
      %1100 = vst.msk [vmem:[#allocation3 + $0x11] sm:$0x3c] %vm1099, %v1084
      %vm1101 = vcmask 392199
      %1102 = vst.msk [vmem:[#allocation3 + $0x12] sm:$0x80] %vm1101, %v1084
      %vm1103 = vcmask 387072
      %1104 = vst.msk [vmem:[#allocation3 + $0x1a] sm:$0x7] %vm1103, %v1085
      %v1105 = vld [vmem:[#allocation3] sm:$0xff]
      %v1106 = vld [vmem:[#allocation3 + $0x8] sm:$0xff]
      %v1107 = vld [vmem:[#allocation3 + $0x10] sm:$0xff]
      %v1108 = vld [vmem:[#allocation3 + $0x1] sm:$0xff]
      %v1109 = vld [vmem:[#allocation3 + $0x9] sm:$0xff]
      %v1110 = vld [vmem:[#allocation3 + $0x11] sm:$0xff]
      %v1111 = vld [vmem:[#allocation3 + $0x2] sm:$0xff]
      %v1112 = vld [vmem:[#allocation3 + $0xa] sm:$0xff]
      %v1113 = vld [vmem:[#allocation3 + $0x12] sm:$0xff]
      %v1114 = vld [vmem:[#allocation3 + $0x6] sm:$0xff]
      %v1115 = vld [vmem:[#allocation3 + $0xe] sm:$0xff]
      %v1116 = vld [vmem:[#allocation3 + $0x16] sm:$0xff]
      %v1117 = vld [vmem:[#allocation3 + $0x7] sm:$0xff]
      %v1118 = vld [vmem:[#allocation3 + $0xf] sm:$0xff]
      %v1119 = vld [vmem:[#allocation3 + $0x17] sm:$0xff]
      %v1120 = vld [vmem:[#allocation3 + $0x18] sm:$0xff]
      %v1121 = vld [vmem:[#allocation3 + $0xc] sm:$0xff]
      %v1122 = vld [vmem:[#allocation3 + $0x14] sm:$0xff]
      %v1123 = vld [vmem:[#allocation3 + $0x1c] sm:$0xff]
      %v1124 = vld [vmem:[#allocation3 + $0xd] sm:$0xff]
      %v1125 = vld [vmem:[#allocation3 + $0x15] sm:$0xff]
      %v1126 = vld [vmem:[#allocation3 + $0x1d] sm:$0xff]
      %v1127 = vld [vmem:[#allocation3 + $0x1e] sm:$0xff]
      %1131 = vrot.lane.b32.xlu0 %v1108, 48
      %v1132 = vpop.permute.xlu0 %1131
      %1133 = vrot.lane.b32.xlu0 %v1109, 48
      %v1134 = vpop.permute.xlu0 %1133
      %1135 = vrot.lane.b32.xlu0 %v1110, 48
      %v1136 = vpop.permute.xlu0 %1135
      %1143 = vrot.lane.b32.xlu0 %v1111, 96
      %v1144 = vpop.permute.xlu0 %1143
      %1145 = vrot.lane.b32.xlu0 %v1112, 96
      %v1146 = vpop.permute.xlu0 %1145
      %1147 = vrot.lane.b32.xlu0 %v1113, 96
      %v1148 = vpop.permute.xlu0 %1147
      %1155 = vrot.lane.b32.xlu0 %v1114, 16
      %v1156 = vpop.permute.xlu0 %1155
      %1157 = vrot.lane.b32.xlu0 %v1115, 16
      %v1158 = vpop.permute.xlu0 %1157
      %1159 = vrot.lane.b32.xlu0 %v1116, 16
      %v1160 = vpop.permute.xlu0 %1159
      %1167 = vrot.lane.b32.xlu0 %v1117, 64
      %v1168 = vpop.permute.xlu0 %1167
      %1169 = vrot.lane.b32.xlu0 %v1118, 64
      %v1170 = vpop.permute.xlu0 %1169
      %1171 = vrot.lane.b32.xlu0 %v1119, 64
      %v1172 = vpop.permute.xlu0 %1171
      %1179 = vrot.lane.b32.xlu0 %v1106, 112
      %v1180 = vpop.permute.xlu0 %1179
      %1181 = vrot.lane.b32.xlu0 %v1107, 112
      %v1182 = vpop.permute.xlu0 %1181
      %1183 = vrot.lane.b32.xlu0 %v1120, 112
      %v1184 = vpop.permute.xlu0 %1183
      %1191 = vrot.lane.b32.xlu0 %v1121, 32
      %v1192 = vpop.permute.xlu0 %1191
      %1193 = vrot.lane.b32.xlu0 %v1122, 32
      %v1194 = vpop.permute.xlu0 %1193
      %1195 = vrot.lane.b32.xlu0 %v1123, 32
      %v1196 = vpop.permute.xlu0 %1195
      %1203 = vrot.lane.b32.xlu0 %v1124, 80
      %v1204 = vpop.permute.xlu0 %1203
      %1205 = vrot.lane.b32.xlu0 %v1125, 80
      %v1206 = vpop.permute.xlu0 %1205
      %1207 = vrot.lane.b32.xlu0 %v1126, 80
      %v1208 = vpop.permute.xlu0 %1207
      %v1212 = vsel %vm628, %v1105, %v1132
      %v1213 = vsel %vm628, %v1106, %v1134
      %v1214 = vsel %vm628, %v1107, %v1136
      %v1215 = vsel %vm631, %v1212, %v1144
      %v1216 = vsel %vm631, %v1213, %v1146
      %v1217 = vsel %vm631, %v1214, %v1148
      %v1218 = vsel %vm634, %v1144, %v1156
      %v1219 = vsel %vm634, %v1146, %v1158
      %v1220 = vsel %vm634, %v1148, %v1160
      %v1221 = vsel %vm638, %v1218, %v1168
      %v1222 = vsel %vm638, %v1219, %v1170
      %v1223 = vsel %vm638, %v1220, %v1172
      %v1224 = vsel %vm828, %v1221, %v1180
      %v1225 = vsel %vm828, %v1222, %v1182
      %v1226 = vsel %vm828, %v1223, %v1184
      %v1227 = vsel %vm265, %v1180, %v1192
      %v1228 = vsel %vm265, %v1182, %v1194
      %v1229 = vsel %vm265, %v1184, %v1196
      %v1230 = vsel %vm739, %v1227, %v1204
      %v1231 = vsel %vm739, %v1228, %v1206
      %v1232 = vsel %vm739, %v1229, %v1208
      %v1233 = vld [vmem:[%s5] sm:$0xff]
      %v1234 = vld [vmem:[%s5 + $0x8] sm:$0xff]
      %v1235 = vld [vmem:[%s5 + $0x10] sm:$0xff]
      %v1236 = vld [vmem:[%s5 + $0x18] sm:$0xff]
      %v1237 = vld [vmem:[%s5 + $0x20] sm:$0xff]
      %v1238 = vld [vmem:[%s5 + $0x28] sm:$0xff]
      %v1239 = vld [vmem:[%s5 + $0x30] sm:$0xff]
      %v1240 = vld [vmem:[%s5 + $0x38] sm:$0xff]
      %v1241 = vld [vmem:[%s5 + $0x40] sm:$0xff]
      %v1242 = vld [vmem:[%s5 + $0x48] sm:$0xff]
      %v1243 = vld [vmem:[%s5 + $0x50] sm:$0xff]
      %v1244 = vld [vmem:[%s5 + $0x58] sm:$0xff]
      %v1245 = vld [vmem:[%s5 + $0x60] sm:$0xff]
      %v1246 = vld [vmem:[%s5 + $0x68] sm:$0xff]
      %v1247 = vld [vmem:[%s5 + $0x70] sm:$0xff]
      %v1248 = vld [vmem:[%s5 + $0x78] sm:$0xff]
      %v1249 = vld [vmem:[%s5 + $0x80] sm:$0xff]
      %v1250 = vld [vmem:[%s5 + $0x88] sm:$0xff]
      %v1251 = vld [vmem:[%s5 + $0x90] sm:$0xff]
      %v1252 = vld [vmem:[%s5 + $0x98] sm:$0xff]
      %v1253 = vld [vmem:[%s5 + $0xa0] sm:$0xff]
      %v1254 = vld [vmem:[%s5 + $0xa8] sm:$0xff]
      %v1255 = vld [vmem:[%s5 + $0xb0] sm:$0xff]
      %v1256 = vld [vmem:[%s5 + $0xb8] sm:$0xff]
      %v1257 = vld [vmem:[%s5 + $0xc0] sm:$0xff]
      %v1258 = vld [vmem:[%s5 + $0xc8] sm:$0xff]
      %v1259 = vld [vmem:[%s5 + $0xd0] sm:$0xff]
      %v1260 = vld [vmem:[%s5 + $0xd8] sm:$0xff]
      %v1261 = vld [vmem:[%s5 + $0xe0] sm:$0xff]
      %v1262 = vld [vmem:[%s5 + $0xe8] sm:$0xff]
      %v1263 = vld [vmem:[%s5 + $0xf0] sm:$0xff]
      %v1264 = vld [vmem:[%s5 + $0xf8] sm:$0xff]
      %v1265 = vld [vmem:[%s5 + $0x100] sm:$0xff]
      %v1266 = vld [vmem:[%s5 + $0x108] sm:$0xff]
      %v1267 = vld [vmem:[%s5 + $0x110] sm:$0xff]
      %v1268 = vld [vmem:[%s5 + $0x118] sm:$0xff]
      %v1269 = vld [vmem:[%s5 + $0x120] sm:$0xff]
      %v1270 = vld [vmem:[%s5 + $0x128] sm:$0xff]
      %v1271 = vld [vmem:[%s5 + $0x130] sm:$0xff]
      %v1272 = vld [vmem:[%s5 + $0x138] sm:$0xff]
      %v1273 = vld [vmem:[%s5 + $0x140] sm:$0xff]
      %v1274 = vld [vmem:[%s5 + $0x148] sm:$0xff]
      %v1275 = vld [vmem:[%s5 + $0x150] sm:$0xff]
      %v1276 = vld [vmem:[%s5 + $0x158] sm:$0xff]
      %v1277 = vld [vmem:[%s5 + $0x160] sm:$0xff]
      %v1278 = vld [vmem:[%s5 + $0x168] sm:$0xff]
      %v1279 = vld [vmem:[%s5 + $0x170] sm:$0xff]
      %v1280 = vld [vmem:[%s5 + $0x178] sm:$0xff]
      %v1281 = vld [vmem:[%s5 + $0x180] sm:$0xff]
      %v1282 = vld [vmem:[%s5 + $0x188] sm:$0xff]
      %v1283 = vld [vmem:[%s5 + $0x190] sm:$0xff]
      %v1284 = vld [vmem:[%s5 + $0x198] sm:$0xff]
      %v1285 = vld [vmem:[%s5 + $0x1a0] sm:$0xff]
      %v1286 = vld [vmem:[%s5 + $0x1a8] sm:$0xff]
      %v1287 = vsel %vm628, %v1115, 0
      %v1289 = vsel %vm628, %v1116, 0
      %v1292 = vsel %vm628, %v1127, 0
      %1294 = vmatprep.subr.mxu0 0.0
      %1295 = vmatpush1.msra.mxu0 %v1233
      %1296 = vmatprep.subr.mxu0 0.0
      %1297 = vmatpush1.msra.mxu0 %v1234
      %1298 = vmatprep.subr.mxu0 0.0
      %1299 = vmatpush1.msra.mxu0 %v1235
      %1300 = vmatprep.subr.mxu0 0.0
      %1301 = vmatpush1.msra.mxu0 %v1236
      %1302 = vmatprep.subr.mxu0 0.0
      %1303 = vmatpush1.msra.mxu0 %v1237
      %1304 = vmatprep.subr.mxu0 0.0
      %1305 = vmatpush1.msra.mxu0 %v1238
      %1306 = vmatprep.subr.mxu0 0.0
      %1307 = vmatpush1.msra.mxu0 %v1239
      %1308 = vmatprep.subr.mxu0 0.0
      %1309 = vmatpush1.msra.mxu0 %v1240
      %1310 = vmatprep.subr.mxu0 0.0
      %1311 = vmatpush1.msra.mxu0 %v1241
      %1312 = vmatprep.subr.mxu0 0.0
      %1313 = vmatpush1.msra.mxu0 %v1242
      %1314 = vmatprep.subr.mxu0 0.0
      %1315 = vmatpush1.msra.mxu0 %v1243
      %1316 = vmatprep.subr.mxu0 0.0
      %1317 = vmatpush1.msra.mxu0 %v1244
      %1318 = vmatprep.subr.mxu0 0.0
      %1319 = vmatpush1.msra.mxu0 %v1245
      %1320 = vmatprep.subr.mxu0 0.0
      %1321 = vmatpush1.msra.mxu0 %v1246
      %1322 = vmatprep.subr.mxu0 0.0
      %1323 = vmatpush1.msra.mxu0 %v1247
      %1324 = vmatprep.subr.mxu0 0.0
      %1325 = vmatpush1.msra.mxu0 %v1248
      %1326 = vmatprep.subr.mxu0 0.0
      %1327 = vmatpush1.msra.mxu0 %v1249
      %1328 = vmatprep.subr.mxu0 0.0
      %1329 = vmatpush1.msra.mxu0 %v1250
      %1330 = vmatprep.subr.mxu0 0.0
      %1331 = vmatpush1.msra.mxu0 %v1251
      %1332 = vmatprep.subr.mxu0 0.0
      %1333 = vmatpush1.msra.mxu0 %v1252
      %1334 = vmatprep.subr.mxu0 0.0
      %1335 = vmatpush1.msra.mxu0 %v1253
      %1336 = vmatprep.subr.mxu0 0.0
      %1337 = vmatpush1.msra.mxu0 %v1254
      %1338 = vmatprep.subr.mxu0 0.0
      %1339 = vmatpush1.msra.mxu0 %v1255
      %1340 = vmatprep.subr.mxu0 0.0
      %1341 = vmatpush1.msra.mxu0 %v1256
      %1342 = vmatprep.subr.mxu0 0.0
      %1343 = vmatpush1.msra.mxu0 %v1257
      %1344 = vmatprep.subr.mxu0 0.0
      %1345 = vmatpush1.msra.mxu0 %v1258
      %1346 = vmatprep.subr.mxu0 0.0
      %1347 = vmatpush1.msra.mxu0 %v1259
      %1348 = vmatprep.subr.mxu0 0.0
      %1349 = vmatpush1.msra.mxu0 %v1260
      %1350 = vmatprep.subr.mxu0 0.0
      %1351 = vmatpush1.msra.mxu0 %v1261
      %1352 = vmatprep.subr.mxu0 0.0
      %1353 = vmatpush1.msra.mxu0 %v1262
      %1354 = vmatprep.subr.mxu0 0.0
      %1355 = vmatpush1.msra.mxu0 %v1263
      %1356 = vmatprep.subr.mxu0 0.0
      %1357 = vmatpush1.msra.mxu0 %v1264
      %1358 = vmatprep.mubr.f32.mxu0 %v1224
      %1359 = vmatmul.mubr.f32.gmra.mrb[0].mxu0 %v1215
      %v1360 = vpop.f32.mrb[0].mxu0
      %v1361 = vadd.f32 0.0, %v1360
      %v1362 = vpop.f32.mrb[0].mxu0
      %1363 = vmatprep.mubr.f32.mxu0 %v1225
      %1364 = vmatmul.mubr.f32.gmra.mrb[0].mxu0 %v1216
      %v1365 = vpop.f32.mrb[0].mxu0
      %v1366 = vadd.f32 0.0, %v1365
      %v1367 = vpop.f32.mrb[0].mxu0
      %1368 = vmatprep.mubr.f32.mxu0 %v1226
      %1369 = vmatmul.mubr.f32.gmra.mrb[0].mxu0 %v1217
      %v1370 = vpop.f32.mrb[0].mxu0
      %v1371 = vadd.f32 0.0, %v1370
      %v1372 = vpop.f32.mrb[0].mxu0
      %1373 = vdwg.mxu0
      %1374 = vmatprep.subr.mxu0 0.0
      %1375 = vmatpush1.msra.mxu0 %v1265
      %1376 = vmatprep.subr.mxu0 0.0
      %1377 = vmatpush1.msra.mxu0 %v1266
      %1378 = vmatprep.subr.mxu0 0.0
      %1379 = vmatpush1.msra.mxu0 %v1267
      %1380 = vmatprep.subr.mxu0 0.0
      %1381 = vmatpush1.msra.mxu0 %v1268
      %1382 = vmatprep.subr.mxu0 0.0
      %1383 = vmatpush1.msra.mxu0 %v1269
      %1384 = vmatprep.subr.mxu0 0.0
      %1385 = vmatpush1.msra.mxu0 %v1270
      %1386 = vmatprep.subr.mxu0 0.0
      %1387 = vmatpush1.msra.mxu0 %v1271
      %1388 = vmatprep.subr.mxu0 0.0
      %1389 = vmatpush1.msra.mxu0 %v1272
      %1390 = vmatprep.subr.mxu0 0.0
      %1391 = vmatpush1.msra.mxu0 %v1273
      %1392 = vmatprep.subr.mxu0 0.0
      %1393 = vmatpush1.msra.mxu0 %v1274
      %1394 = vmatprep.subr.mxu0 0.0
      %1395 = vmatpush1.msra.mxu0 %v1275
      %1396 = vmatprep.subr.mxu0 0.0
      %1397 = vmatpush1.msra.mxu0 %v1276
      %1398 = vmatprep.subr.mxu0 0.0
      %1399 = vmatpush1.msra.mxu0 %v1277
      %1400 = vmatprep.subr.mxu0 0.0
      %1401 = vmatpush1.msra.mxu0 %v1278
      %1402 = vmatprep.subr.mxu0 0.0
      %1403 = vmatpush1.msra.mxu0 %v1279
      %1404 = vmatprep.subr.mxu0 0.0
      %1405 = vmatpush1.msra.mxu0 %v1280
      %1406 = vmatprep.subr.mxu0 0.0
      %1407 = vmatpush1.msra.mxu0 %v1281
      %1408 = vmatprep.subr.mxu0 0.0
      %1409 = vmatpush1.msra.mxu0 %v1282
      %1410 = vmatprep.subr.mxu0 0.0
      %1411 = vmatpush1.msra.mxu0 %v1283
      %1412 = vmatprep.subr.mxu0 0.0
      %1413 = vmatpush1.msra.mxu0 %v1284
      %1414 = vmatprep.subr.mxu0 0.0
      %1415 = vmatpush1.msra.mxu0 %v1285
      %1416 = vmatprep.subr.mxu0 0.0
      %1417 = vmatpush1.msra.mxu0 %v1286
      %1418 = vmatprep.subr.mxu0 0.0
      %1419 = vmatpush1.msra.mxu0 0.0
      %1420 = vmatprep.subr.mxu0 0.0
      %1421 = vmatpush1.msra.mxu0 0.0
      %1422 = vmatprep.subr.mxu0 0.0
      %1423 = vmatpush1.msra.mxu0 0.0
      %1424 = vmatprep.subr.mxu0 0.0
      %1425 = vmatpush1.msra.mxu0 0.0
      %1426 = vmatprep.subr.mxu0 0.0
      %1427 = vmatpush1.msra.mxu0 0.0
      %1428 = vmatprep.subr.mxu0 0.0
      %1429 = vmatpush1.msra.mxu0 0.0
      %1430 = vmatprep.subr.mxu0 0.0
      %1431 = vmatpush1.msra.mxu0 0.0
      %1432 = vmatprep.subr.mxu0 0.0
      %1433 = vmatpush1.msra.mxu0 0.0
      %1434 = vmatprep.subr.mxu0 0.0
      %1435 = vmatpush1.msra.mxu0 0.0
      %1436 = vmatprep.subr.mxu0 0.0
      %1437 = vmatpush1.msra.mxu0 0.0
      %1438 = vmatprep.mubr.f32.mxu0 %v1287
      %1439 = vmatmul.mubr.f32.gmra.mrb[0].mxu0 %v1230
      %v1440 = vpop.f32.mrb[0].mxu0
      %v1441 = vadd.f32 %v1361, %v1440
      %v1442 = vpop.f32.mrb[0].mxu0
      %1443 = vmatprep.mubr.f32.mxu0 %v1289
      %1444 = vmatmul.mubr.f32.gmra.mrb[0].mxu0 %v1231
      %v1445 = vpop.f32.mrb[0].mxu0
      %v1446 = vadd.f32 %v1366, %v1445
      %v1447 = vpop.f32.mrb[0].mxu0
      %1448 = vmatprep.mubr.f32.mxu0 %v1292
      %1449 = vmatmul.mubr.f32.gmra.mrb[0].mxu0 %v1232
      %v1450 = vpop.f32.mrb[0].mxu0
      %v1451 = vadd.f32 %v1371, %v1450
      %v1452 = vpop.f32.mrb[0].mxu0
      %1453 = vdwg.mxu0
      %1454 = vst.msk [vmem:[%s251] sm:$0xff] %vm634, %v1441
      %1455 = vst.msk [vmem:[%s251 + $0x8] sm:$0xff] %vm634, %v1446
      %1456 = vst.msk [vmem:[%s251 + $0x10] sm:$0xff] %vm634, %v1451
      %p1457 = scmp.lt.s32.totalorder %s17, 1
      %s1458 = scalar_select %p1457, %s17, 1
      %s1459 = smul.addr %s1458, 3
      %s1460 = smul.addr %s1459, 8
      %s1461 = scalar_lea.vmem %s6, %s1460
      // Predicated region
      $region45: #{tpu_custom_call.1} parent=43 // pred_check
        %p1462 = pneg %p166
      $region46: #{tpu_custom_call.1} parent=43 // pred_check_branch
        %1464 = sbr.rel (%p1462) target = $region48
      $region47: #{tpu_custom_call.1} parent=43 // pred_region
        _
      $region48: #{tpu_custom_call.1} parent=43 // pred_fallthru
        _
    $region44: #{tpu_custom_call.1} parent=5 // pred_fallthru
      _
    %p1465 = scmp.le.s32.totalorder 2, %s12
    // Predicated region
    $region49: #{tpu_custom_call.1} parent=5 // pred_check
      %p1466 = pneg %p1465
    $region50: #{tpu_custom_call.1} parent=5 // pred_check_branch
      %1468 = sbr.rel (%p1466) target = $region52
    $region51: #{tpu_custom_call.1} parent=5 // pred_region
      %s1469 = ssub.s32 %s12, 2
      // Predicated region
      $region53: #{tpu_custom_call.1} parent=51 // pred_check
        %p1470 = pneg %p172
      $region54: #{tpu_custom_call.1} parent=51 // pred_check_branch
        %1472 = sbr.rel (%p1470) target = $region56
      $region55: #{tpu_custom_call.1} parent=51 // pred_region
        %p1473 = scmp.lt.s32.totalorder %s18, 1
        %s1474 = scalar_select %p1473, %s18, 1
        %s1475 = smul.addr %s1474, 3
        %s1476 = smul.addr %s1475, 8
        %s1477 = scalar_lea.vmem %s6, %s1476
      $region56: #{tpu_custom_call.1} parent=51 // pred_fallthru
        _
    $region52: #{tpu_custom_call.1} parent=5 // pred_fallthru
      _
  $region6: #{tpu_custom_call.1} parent=0 // loop_footer
    %s16 = sadd.s32 1, %s12
  $region7: #{tpu_custom_call.1} parent=0 // loop_footer_branch
    %11 = sbr.rel target = $region3
  $region8: #{tpu_custom_call.1} parent=0 // loop_exit
    _

</llo_original>
